<compile_context>
chip_gen: v5e
topology: v5e:2x2
jax: 0.10.0
libtpu: 0.0.40
codegen_flags: <defaults>
</compile_context>

<pallas_src>
import functools

import jax
import jax.numpy as jnp
from jax.experimental import pallas as pl
from jax.experimental.pallas import tpu as pltpu


NEG_SLOPE = 0.01      # nn.LeakyReLU default negative_slope
HIDDEN = 64
OUT_FEATURES = 5
LANE = 128


def _leaky_relu(x):
    # Equivalent to LeakyReLU for 0 < slope < 1; one mul + one max (no select).
    return jnp.maximum(x, NEG_SLOPE * x)


# ----------------------------- Pallas kernel --------------------------------

def _mlp_fused_kernel(x_ref, w1_ref, b1_ref, w2_ref, b2_ref, w3_ref, b3_ref, o_ref):
    # x_ref : (TM, Cin) f32      w1_ref: (Cin, 64) bf16   b1_ref: (1, 64) f32
    # w2_ref: (64, 64) bf16      b2_ref: (1, 64) f32
    # w3_ref: (64, 5)  bf16      b3_ref: (1, 5)  f32      o_ref : (TM, 5) f32
    x = x_ref[...].astype(jnp.bfloat16)                     # single-pass bf16 MXU
    h = jnp.dot(x, w1_ref[...], preferred_element_type=jnp.float32)
    h = _leaky_relu(h + b1_ref[...])
    h = jnp.dot(h.astype(jnp.bfloat16), w2_ref[...],
                preferred_element_type=jnp.float32)
    h = _leaky_relu(h + b2_ref[...])
    h = jnp.dot(h.astype(jnp.bfloat16), w3_ref[...],
                preferred_element_type=jnp.float32)
    o_ref[...] = _leaky_relu(h + b3_ref[...]).astype(o_ref.dtype)


# ------------------------------ tiling helper --------------------------------

def _pick_tm(m, tm_target):
    """Row tile: big (amortize per-step cost), sublane-aligned, >=2 grid steps."""
    if m <= 8:
        return m                     # block == full array dim (allowed)
    tm = min(tm_target, m)
    tm = min(tm, -(-m // 2))         # keep at least 2 grid steps (v7x megacore)
    tm = max(8, (tm // 8) * 8)       # sublane-aligned
    return tm


# ------------------------------ wrapper --------------------------------------

@functools.partial(jax.jit, static_argnames=("tm_target",))
def mlp_forward(x, params, *, tm_target=1024):
    """x: (..., Cin) float32. params: PyTorch-layout Linear weights/biases."""
    cin = x.shape[-1]
    lead_shape = x.shape[:-1]
    xm = x.reshape(-1, cin)
    m = xm.shape[0]

    tm = _pick_tm(m, tm_target)
    grid = (pl.cdiv(m, tm),)         # ragged final block handled by Pallas masking

    # layout plumbing: PyTorch Linear weight is (out, in) -> (in, out) for matmul.
    # Weights in bf16 (pins single-pass MXU); biases stay f32 (added post-acc).
    w1 = jnp.transpose(params["w1"]).astype(jnp.bfloat16)      # (Cin, 64)
    w2 = jnp.transpose(params["w2"]).astype(jnp.bfloat16)      # (64, 64)
    w3 = jnp.transpose(params["w3"]).astype(jnp.bfloat16)      # (64, 5)
    b1 = params["b1"].reshape(1, HIDDEN).astype(jnp.float32)
    b2 = params["b2"].reshape(1, HIDDEN).astype(jnp.float32)
    b3 = params["b3"].reshape(1, OUT_FEATURES).astype(jnp.float32)

    # Per-step VMEM estimate (double-buffered in/out blocks, lane-padded, plus
    # f32 intermediates). Only pass an explicit limit when it would not fit the
    # v5e 16 MiB default scoped VMEM.
    est = 4 * tm * (max(cin, LANE) + LANE) * 2 + 4 * tm * 2 * LANE + (256 << 10)
    compiler_kwargs = dict(dimension_semantics=("parallel",))
    if est > (12 << 20):
        compiler_kwargs["vmem_limit_bytes"] = min(2 * est, 64 << 20)

    out = pl.pallas_call(
        _mlp_fused_kernel,
        out_shape=jax.ShapeDtypeStruct((m, OUT_FEATURES), x.dtype),
        grid=grid,
        in_specs=[
            pl.BlockSpec((tm, cin), lambda i: (i, 0)),
            pl.BlockSpec((cin, HIDDEN), lambda i: (0, 0)),
            pl.BlockSpec((1, HIDDEN), lambda i: (0, 0)),
            pl.BlockSpec((HIDDEN, HIDDEN), lambda i: (0, 0)),
            pl.BlockSpec((1, HIDDEN), lambda i: (0, 0)),
            pl.BlockSpec((HIDDEN, OUT_FEATURES), lambda i: (0, 0)),
            pl.BlockSpec((1, OUT_FEATURES), lambda i: (0, 0)),
        ],
        out_specs=pl.BlockSpec((tm, OUT_FEATURES), lambda i: (i, 0)),
        compiler_params=pltpu.CompilerParams(**compiler_kwargs),
    )(xm, w1, b1, w2, b2, w3, b3)

    return out.reshape(lead_shape + (OUT_FEATURES,))


# ------------------------------ reference ------------------------------------

def reference_forward(x, params):
    p = jax.lax.Precision.HIGHEST    # true-f32 reference; kernel uses bf16 MXU pass
    h = _leaky_relu(jnp.dot(x, params["w1"].T, precision=p) + params["b1"])
    h = _leaky_relu(jnp.dot(h, params["w2"].T, precision=p) + params["b2"])
    h = _leaky_relu(jnp.dot(h, params["w3"].T, precision=p) + params["b3"])
    return h


# -------------------------------- main ----------------------------------------

if __name__ == "__main__":
    in_channels = 32
    key = jax.random.PRNGKey(0)
    k_x, k_w1, k_b1, k_w2, k_b2, k_w3, k_b3 = jax.random.split(key, 7)

    # small batch of rows: (2, 512, 32) -> 1024 rows through the MLP
    x = jax.random.normal(k_x, (2, 512, in_channels), dtype=jnp.float32)

    params = {
        "w1": 0.1 * jax.random.normal(k_w1, (HIDDEN, in_channels), jnp.float32),
        "b1": 0.1 * jax.random.normal(k_b1, (HIDDEN,), jnp.float32),
        "w2": 0.1 * jax.random.normal(k_w2, (HIDDEN, HIDDEN), jnp.float32),
        "b2": 0.1 * jax.random.normal(k_b2, (HIDDEN,), jnp.float32),
        "w3": 0.1 * jax.random.normal(k_w3, (OUT_FEATURES, HIDDEN), jnp.float32),
        "b3": 0.1 * jax.random.normal(k_b3, (OUT_FEATURES,), jnp.float32),
    }

    out = jax.block_until_ready(mlp_forward(x, params))
    ref = jax.block_until_ready(reference_forward(x, params))

    assert out.shape == (2, 512, OUT_FEATURES), out.shape
    # bf16 single-pass MXU vs f32 reference: tolerance widened accordingly.
    assert jnp.allclose(out, ref, atol=2e-2, rtol=2e-2), \
        float(jnp.max(jnp.abs(out - ref)))

    print("KERNEL_OK")
</pallas_src>

<mosaic_0001>
module attributes {stable_mosaic.version = 11 : i64} {
  func.func @_mlp_fused_kernel(%arg0: i32, %arg1: memref<512x32xf32, #tpu.memory_space<vmem>>, %arg2: memref<32x64xbf16, #tpu.memory_space<vmem>>, %arg3: memref<1x64xf32, #tpu.memory_space<vmem>>, %arg4: memref<64x64xbf16, #tpu.memory_space<vmem>>, %arg5: memref<1x64xf32, #tpu.memory_space<vmem>>, %arg6: memref<64x5xbf16, #tpu.memory_space<vmem>>, %arg7: memref<1x5xf32, #tpu.memory_space<vmem>>, %arg8: memref<512x5xf32, #tpu.memory_space<vmem>>) attributes {dimension_semantics = [#tpu.dimension_semantics<parallel>], iteration_bounds = array<i64: 2>, scalar_prefetch = 0 : i64, scratch_operands = 0 : i64, tpu.core_type = #tpu.core_type<tc>, window_params = [{transform_indices = @transform_0, window_bounds = array<i64: 512, 32>}, {pipeline_mode = #tpu.pipeline_mode<synchronous>, transform_indices = @transform_1, window_bounds = array<i64: 32, 64>}, {pipeline_mode = #tpu.pipeline_mode<synchronous>, transform_indices = @transform_2, window_bounds = array<i64: 1, 64>}, {pipeline_mode = #tpu.pipeline_mode<synchronous>, transform_indices = @transform_3, window_bounds = array<i64: 64, 64>}, {pipeline_mode = #tpu.pipeline_mode<synchronous>, transform_indices = @transform_4, window_bounds = array<i64: 1, 64>}, {pipeline_mode = #tpu.pipeline_mode<synchronous>, transform_indices = @transform_5, window_bounds = array<i64: 64, 5>}, {pipeline_mode = #tpu.pipeline_mode<synchronous>, transform_indices = @transform_6, window_bounds = array<i64: 1, 5>}, {transform_indices = @transform_7, window_bounds = array<i64: 512, 5>}]} {
    %c0 = arith.constant 0 : index
    %c0_0 = arith.constant 0 : index
    %0 = vector.load %arg1[%c0, %c0_0] : memref<512x32xf32, #tpu.memory_space<vmem>>, vector<512x32xf32>
    %1 = arith.truncf %0 : vector<512x32xf32> to vector<512x32xbf16>
    %c0_1 = arith.constant 0 : index
    %c0_2 = arith.constant 0 : index
    %2 = vector.load %arg2[%c0_1, %c0_2] : memref<32x64xbf16, #tpu.memory_space<vmem>>, vector<32x64xbf16>
    %cst = arith.constant dense<0.000000e+00> : vector<512x64xf32>
    %3 = tpu.matmul %1, %2, %cst {dimension_numbers = #tpu.dot_dimension_numbers<[1], [0], [0], [1], [0, 0, 1, 1], [], []>} : vector<512x32xbf16>, vector<32x64xbf16>, vector<512x64xf32> -> vector<512x64xf32>
    %c0_3 = arith.constant 0 : index
    %c0_4 = arith.constant 0 : index
    %4 = vector.load %arg3[%c0_3, %c0_4] : memref<1x64xf32, #tpu.memory_space<vmem>>, vector<1x64xf32>
    %5 = vector.broadcast %4 : vector<1x64xf32> to vector<512x64xf32>
    %6 = arith.addf %3, %5 : vector<512x64xf32>
    %cst_5 = arith.constant 0.00999999977 : f32
    %7 = vector.broadcast %cst_5 : f32 to vector<512x64xf32>
    %8 = arith.mulf %7, %6 : vector<512x64xf32>
    %9 = arith.maximumf %6, %8 : vector<512x64xf32>
    %10 = arith.truncf %9 : vector<512x64xf32> to vector<512x64xbf16>
    %c0_6 = arith.constant 0 : index
    %c0_7 = arith.constant 0 : index
    %11 = vector.load %arg4[%c0_6, %c0_7] : memref<64x64xbf16, #tpu.memory_space<vmem>>, vector<64x64xbf16>
    %cst_8 = arith.constant dense<0.000000e+00> : vector<512x64xf32>
    %12 = tpu.matmul %10, %11, %cst_8 {dimension_numbers = #tpu.dot_dimension_numbers<[1], [0], [0], [1], [0, 0, 1, 1], [], []>} : vector<512x64xbf16>, vector<64x64xbf16>, vector<512x64xf32> -> vector<512x64xf32>
    %c0_9 = arith.constant 0 : index
    %c0_10 = arith.constant 0 : index
    %13 = vector.load %arg5[%c0_9, %c0_10] : memref<1x64xf32, #tpu.memory_space<vmem>>, vector<1x64xf32>
    %14 = vector.broadcast %13 : vector<1x64xf32> to vector<512x64xf32>
    %15 = arith.addf %12, %14 : vector<512x64xf32>
    %cst_11 = arith.constant 0.00999999977 : f32
    %16 = vector.broadcast %cst_11 : f32 to vector<512x64xf32>
    %17 = arith.mulf %16, %15 : vector<512x64xf32>
    %18 = arith.maximumf %15, %17 : vector<512x64xf32>
    %19 = arith.truncf %18 : vector<512x64xf32> to vector<512x64xbf16>
    %c0_12 = arith.constant 0 : index
    %c0_13 = arith.constant 0 : index
    %20 = vector.load %arg6[%c0_12, %c0_13] : memref<64x5xbf16, #tpu.memory_space<vmem>>, vector<64x5xbf16>
    %cst_14 = arith.constant dense<0.000000e+00> : vector<512x5xf32>
    %21 = tpu.matmul %19, %20, %cst_14 {dimension_numbers = #tpu.dot_dimension_numbers<[1], [0], [0], [1], [0, 0, 1, 1], [], []>} : vector<512x64xbf16>, vector<64x5xbf16>, vector<512x5xf32> -> vector<512x5xf32>
    %c0_15 = arith.constant 0 : index
    %c0_16 = arith.constant 0 : index
    %22 = vector.load %arg7[%c0_15, %c0_16] : memref<1x5xf32, #tpu.memory_space<vmem>>, vector<1x5xf32>
    %23 = vector.broadcast %22 : vector<1x5xf32> to vector<512x5xf32>
    %24 = arith.addf %21, %23 : vector<512x5xf32>
    %cst_17 = arith.constant 0.00999999977 : f32
    %25 = vector.broadcast %cst_17 : f32 to vector<512x5xf32>
    %26 = arith.mulf %25, %24 : vector<512x5xf32>
    %27 = arith.maximumf %24, %26 : vector<512x5xf32>
    %c0_18 = arith.constant 0 : index
    %c0_19 = arith.constant 0 : index
    %28 = vector.load %arg8[%c0_18, %c0_19] : memref<512x5xf32, #tpu.memory_space<vmem>>, vector<512x5xf32>
    tpu.vector_store %arg8[%c0_18, %c0_19], %27 {strides = array<i32>} : memref<512x5xf32, #tpu.memory_space<vmem>>, vector<512x5xf32>,
    return
  }
  func.func @transform_0(%arg0: i32) -> (i32, i32) {
    %c0_i32 = arith.constant 0 : i32
    %c0_i32_0 = arith.constant 0 : i32
    return %arg0, %c0_i32 : i32, i32
  }
  func.func @transform_1(%arg0: i32) -> (i32, i32) {
    %c0_i32 = arith.constant 0 : i32
    %c0_i32_0 = arith.constant 0 : i32
    %c0_i32_1 = arith.constant 0 : i32
    return %c0_i32, %c0_i32_0 : i32, i32
  }
  func.func @transform_2(%arg0: i32) -> (i32, i32) {
    %c0_i32 = arith.constant 0 : i32
    %c0_i32_0 = arith.constant 0 : i32
    %c0_i32_1 = arith.constant 0 : i32
    return %c0_i32, %c0_i32_0 : i32, i32
  }
  func.func @transform_3(%arg0: i32) -> (i32, i32) {
    %c0_i32 = arith.constant 0 : i32
    %c0_i32_0 = arith.constant 0 : i32
    %c0_i32_1 = arith.constant 0 : i32
    return %c0_i32, %c0_i32_0 : i32, i32
  }
  func.func @transform_4(%arg0: i32) -> (i32, i32) {
    %c0_i32 = arith.constant 0 : i32
    %c0_i32_0 = arith.constant 0 : i32
    %c0_i32_1 = arith.constant 0 : i32
    return %c0_i32, %c0_i32_0 : i32, i32
  }
  func.func @transform_5(%arg0: i32) -> (i32, i32) {
    %c0_i32 = arith.constant 0 : i32
    %c0_i32_0 = arith.constant 0 : i32
    %c0_i32_1 = arith.constant 0 : i32
    return %c0_i32, %c0_i32_0 : i32, i32
  }
  func.func @transform_6(%arg0: i32) -> (i32, i32) {
    %c0_i32 = arith.constant 0 : i32
    %c0_i32_0 = arith.constant 0 : i32
    %c0_i32_1 = arith.constant 0 : i32
    return %c0_i32, %c0_i32_0 : i32, i32
  }
  func.func @transform_7(%arg0: i32) -> (i32, i32) {
    %c0_i32 = arith.constant 0 : i32
    %c0_i32_0 = arith.constant 0 : i32
    return %arg0, %c0_i32 : i32, i32
  }
}

</mosaic_0001>

<llo_original>
// kernel: mlp_forward.1
$region0: #{mlp_forward.1}
  #allocation0 [shape = 'u32[]', space=smem, size = 0x4, offset = 0x4, fixed_abs, tag = 'smem constant byte address 0x4 - core index']
  #allocation1 [shape = 'u32[72,128]{1,0:T(1,128)}', space=vmem, size = 0x9000, scoped, tag = 'internal scratch']
  %s0 = inlined_call_operand.vmem [shape: f32[1024,32], index: 0, kind: input, shape index: {}]
  %s1 = inlined_call_operand.vmem [shape: bf16[32,64], index: 1, kind: input, shape index: {}]
  %s2 = inlined_call_operand.vmem [shape: f32[1,64], index: 2, kind: input, shape index: {}]
  %s3 = inlined_call_operand.vmem [shape: bf16[64,64], index: 3, kind: input, shape index: {}]
  %s4 = inlined_call_operand.vmem [shape: f32[1,64], index: 4, kind: input, shape index: {}]
  %s5 = inlined_call_operand.vmem [shape: bf16[64,5], index: 5, kind: input, shape index: {}]
  %s6 = inlined_call_operand.vmem [shape: f32[1,5], index: 6, kind: input, shape index: {}]
  %s7 = inlined_call_operand.vmem [shape: f32[1024,5], index: 7, kind: output, shape index: {}]
  %s8 = sld [smem:[#allocation0]]
  $region61: #{mlp_forward.1} parent=0
    _
  %s10 = ssub.s32 1, %s8
  %s11 = scalar_select 0, %s10, %s8
  loop: start=0, step=1, limit=4
  $region2: #{mlp_forward.1} parent=0 // loop_pre_header
    _
  $region3: #{mlp_forward.1} parent=0 // loop_header
    %s13 = sphi 0, %s17
    %p14 = scmp.ge.s32.totalorder %s13, 4
    %s23 = sphi 0, %s25
    %s26 = sphi 0, %s23
    %s27 = sphi 0, %s26
    %s43 = sphi 0, %s27
    %s47 = sphi 0, %s47
    %s49 = sphi 0, %s47
    %s50 = sphi 0, %s49
    %s64 = sphi 0, %s50
    %s68 = sphi 0, %s68
    %s70 = sphi 0, %s68
    %s71 = sphi 0, %s70
    %s85 = sphi 0, %s71
    %s89 = sphi 0, %s89
    %s91 = sphi 0, %s89
    %s92 = sphi 0, %s91
    %s106 = sphi 0, %s92
    %s110 = sphi 0, %s110
    %s112 = sphi 0, %s110
    %s113 = sphi 0, %s112
    %s127 = sphi 0, %s113
    %s131 = sphi 0, %s131
    %s133 = sphi 0, %s131
    %s134 = sphi 0, %s133
    %s148 = sphi 0, %s134
    %s152 = sphi 0, %s152
    %s154 = sphi 0, %s152
    %s155 = sphi 0, %s154
    %s169 = sphi 0, %s155
    %s175 = sphi 0, %s177
    %s178 = sphi 0, %s175
    %s179 = sphi 0, %s178
    %s195 = sphi 0, %s179
  $region4: #{mlp_forward.1} parent=0 // loop_header_branch
    %16 = sbr.rel (%p14) target = $region8
  $region5: #{mlp_forward.1} parent=0 // loop_body
    %s18 = ssub.s32 %s13, 1
    %s19 = ssub.s32 %s13, 2
    %s20 = sadd.s32 %s13, 1
    %s21 = ssub.s32 %s13, %s20
    %p22 = scmp.eq.s32.totalorder %s21, 0
    %s24 = sadd.s32 %s23, 1
    %s25 = scalar_select %p22, %s23, %s24
    %p28 = pneg %p22
    %p29 = scmp.eq.s32.totalorder %s13, 1
    %p30 = por %p28, %p29
    %p31 = scmp.ne.s32.totalorder %s23, %s26
    %p32 = scmp.eq.s32.totalorder %s13, 0
    %p33 = por %p31, %p32
    %p34 = scmp.ne.s32.totalorder %s23, %s26
    %p35 = scmp.eq.s32.totalorder %s18, 1
    %p36 = por %p34, %p35
    %p37 = scmp.ne.s32.totalorder %s26, %s27
    %p38 = scmp.eq.s32.totalorder %s18, 0
    %p39 = por %p37, %p38
    %p40 = scmp.ne.s32.totalorder %s26, %s27
    %p41 = scmp.eq.s32.totalorder %s19, 1
    %p42 = por %p40, %p41
    %p44 = scmp.ne.s32.totalorder %s27, %s43
    %p45 = scmp.eq.s32.totalorder %s19, 0
    %p46 = por %p44, %p45
    %s48 = sadd.s32 %s47, 1
    %p51 = scmp.eq.s32.totalorder %s13, 1
    %p52 = scmp.ne.s32.totalorder %s47, %s49
    %p53 = scmp.eq.s32.totalorder %s13, 0
    %p54 = por %p52, %p53
    %p55 = scmp.ne.s32.totalorder %s47, %s49
    %p56 = scmp.eq.s32.totalorder %s18, 1
    %p57 = por %p55, %p56
    %p58 = scmp.ne.s32.totalorder %s49, %s50
    %p59 = scmp.eq.s32.totalorder %s18, 0
    %p60 = por %p58, %p59
    %p61 = scmp.ne.s32.totalorder %s49, %s50
    %p62 = scmp.eq.s32.totalorder %s19, 1
    %p63 = por %p61, %p62
    %p65 = scmp.ne.s32.totalorder %s50, %s64
    %p66 = scmp.eq.s32.totalorder %s19, 0
    %p67 = por %p65, %p66
    %s69 = sadd.s32 %s68, 1
    %p72 = scmp.eq.s32.totalorder %s13, 1
    %p73 = scmp.ne.s32.totalorder %s68, %s70
    %p74 = scmp.eq.s32.totalorder %s13, 0
    %p75 = por %p73, %p74
    %p76 = scmp.ne.s32.totalorder %s68, %s70
    %p77 = scmp.eq.s32.totalorder %s18, 1
    %p78 = por %p76, %p77
    %p79 = scmp.ne.s32.totalorder %s70, %s71
    %p80 = scmp.eq.s32.totalorder %s18, 0
    %p81 = por %p79, %p80
    %p82 = scmp.ne.s32.totalorder %s70, %s71
    %p83 = scmp.eq.s32.totalorder %s19, 1
    %p84 = por %p82, %p83
    %p86 = scmp.ne.s32.totalorder %s71, %s85
    %p87 = scmp.eq.s32.totalorder %s19, 0
    %p88 = por %p86, %p87
    %s90 = sadd.s32 %s89, 1
    %p93 = scmp.eq.s32.totalorder %s13, 1
    %p94 = scmp.ne.s32.totalorder %s89, %s91
    %p95 = scmp.eq.s32.totalorder %s13, 0
    %p96 = por %p94, %p95
    %p97 = scmp.ne.s32.totalorder %s89, %s91
    %p98 = scmp.eq.s32.totalorder %s18, 1
    %p99 = por %p97, %p98
    %p100 = scmp.ne.s32.totalorder %s91, %s92
    %p101 = scmp.eq.s32.totalorder %s18, 0
    %p102 = por %p100, %p101
    %p103 = scmp.ne.s32.totalorder %s91, %s92
    %p104 = scmp.eq.s32.totalorder %s19, 1
    %p105 = por %p103, %p104
    %p107 = scmp.ne.s32.totalorder %s92, %s106
    %p108 = scmp.eq.s32.totalorder %s19, 0
    %p109 = por %p107, %p108
    %s111 = sadd.s32 %s110, 1
    %p114 = scmp.eq.s32.totalorder %s13, 1
    %p115 = scmp.ne.s32.totalorder %s110, %s112
    %p116 = scmp.eq.s32.totalorder %s13, 0
    %p117 = por %p115, %p116
    %p118 = scmp.ne.s32.totalorder %s110, %s112
    %p119 = scmp.eq.s32.totalorder %s18, 1
    %p120 = por %p118, %p119
    %p121 = scmp.ne.s32.totalorder %s112, %s113
    %p122 = scmp.eq.s32.totalorder %s18, 0
    %p123 = por %p121, %p122
    %p124 = scmp.ne.s32.totalorder %s112, %s113
    %p125 = scmp.eq.s32.totalorder %s19, 1
    %p126 = por %p124, %p125
    %p128 = scmp.ne.s32.totalorder %s113, %s127
    %p129 = scmp.eq.s32.totalorder %s19, 0
    %p130 = por %p128, %p129
    %s132 = sadd.s32 %s131, 1
    %p135 = scmp.eq.s32.totalorder %s13, 1
    %p136 = scmp.ne.s32.totalorder %s131, %s133
    %p137 = scmp.eq.s32.totalorder %s13, 0
    %p138 = por %p136, %p137
    %p139 = scmp.ne.s32.totalorder %s131, %s133
    %p140 = scmp.eq.s32.totalorder %s18, 1
    %p141 = por %p139, %p140
    %p142 = scmp.ne.s32.totalorder %s133, %s134
    %p143 = scmp.eq.s32.totalorder %s18, 0
    %p144 = por %p142, %p143
    %p145 = scmp.ne.s32.totalorder %s133, %s134
    %p146 = scmp.eq.s32.totalorder %s19, 1
    %p147 = por %p145, %p146
    %p149 = scmp.ne.s32.totalorder %s134, %s148
    %p150 = scmp.eq.s32.totalorder %s19, 0
    %p151 = por %p149, %p150
    %s153 = sadd.s32 %s152, 1
    %p156 = scmp.eq.s32.totalorder %s13, 1
    %p157 = scmp.ne.s32.totalorder %s152, %s154
    %p158 = scmp.eq.s32.totalorder %s13, 0
    %p159 = por %p157, %p158
    %p160 = scmp.ne.s32.totalorder %s152, %s154
    %p161 = scmp.eq.s32.totalorder %s18, 1
    %p162 = por %p160, %p161
    %p163 = scmp.ne.s32.totalorder %s154, %s155
    %p164 = scmp.eq.s32.totalorder %s18, 0
    %p165 = por %p163, %p164
    %p166 = scmp.ne.s32.totalorder %s154, %s155
    %p167 = scmp.eq.s32.totalorder %s19, 1
    %p168 = por %p166, %p167
    %p170 = scmp.ne.s32.totalorder %s155, %s169
    %p171 = scmp.eq.s32.totalorder %s19, 0
    %p172 = por %p170, %p171
    %s173 = ssub.s32 %s13, %s20
    %p174 = scmp.eq.s32.totalorder %s173, 0
    %s176 = sadd.s32 %s175, 1
    %s177 = scalar_select %p174, %s175, %s176
    %p180 = pneg %p174
    %p181 = scmp.eq.s32.totalorder %s13, 1
    %p182 = por %p180, %p181
    %p183 = scmp.ne.s32.totalorder %s175, %s178
    %p184 = scmp.eq.s32.totalorder %s13, 0
    %p185 = por %p183, %p184
    %p186 = scmp.ne.s32.totalorder %s175, %s178
    %p187 = scmp.eq.s32.totalorder %s18, 1
    %p188 = por %p186, %p187
    %p189 = scmp.ne.s32.totalorder %s178, %s179
    %p190 = scmp.eq.s32.totalorder %s18, 0
    %p191 = por %p189, %p190
    %p192 = scmp.ne.s32.totalorder %s178, %s179
    %p193 = scmp.eq.s32.totalorder %s19, 1
    %p194 = por %p192, %p193
    %p196 = scmp.ne.s32.totalorder %s179, %s195
    %p197 = scmp.eq.s32.totalorder %s19, 0
    %p198 = por %p196, %p197
    %p199 = scmp.le.s32.totalorder 1, %s13
    %p200 = scmp.lt.s32.totalorder %s13, 3
    %p201 = pnand %p199, %p200
    %p202 = pneg %p201
    // Predicated region
    $region9: #{mlp_forward.1} parent=5 // pred_check
      _
    $region10: #{mlp_forward.1} parent=5 // pred_check_branch
      %204 = sbr.rel (%p201) target = $region12
    $region11: #{mlp_forward.1} parent=5 // pred_region
      %s205 = ssub.s32 %s13, 1
      // Predicated region
      $region13: #{mlp_forward.1} parent=11 // pred_check
        %p206 = pneg %p60
      $region14: #{mlp_forward.1} parent=11 // pred_check_branch
        %208 = sbr.rel (%p206) target = $region16
      $region15: #{mlp_forward.1} parent=11 // pred_region
        _
      $region16: #{mlp_forward.1} parent=11 // pred_fallthru
        _
      // Predicated region
      $region17: #{mlp_forward.1} parent=11 // pred_check
        %p209 = pneg %p81
      $region18: #{mlp_forward.1} parent=11 // pred_check_branch
        %211 = sbr.rel (%p209) target = $region20
      $region19: #{mlp_forward.1} parent=11 // pred_region
        _
      $region20: #{mlp_forward.1} parent=11 // pred_fallthru
        _
      // Predicated region
      $region21: #{mlp_forward.1} parent=11 // pred_check
        %p212 = pneg %p102
      $region22: #{mlp_forward.1} parent=11 // pred_check_branch
        %214 = sbr.rel (%p212) target = $region24
      $region23: #{mlp_forward.1} parent=11 // pred_region
        _
      $region24: #{mlp_forward.1} parent=11 // pred_fallthru
        _
      // Predicated region
      $region25: #{mlp_forward.1} parent=11 // pred_check
        %p215 = pneg %p123
      $region26: #{mlp_forward.1} parent=11 // pred_check_branch
        %217 = sbr.rel (%p215) target = $region28
      $region27: #{mlp_forward.1} parent=11 // pred_region
        _
      $region28: #{mlp_forward.1} parent=11 // pred_fallthru
        _
      // Predicated region
      $region29: #{mlp_forward.1} parent=11 // pred_check
        %p218 = pneg %p144
      $region30: #{mlp_forward.1} parent=11 // pred_check_branch
        %220 = sbr.rel (%p218) target = $region32
      $region31: #{mlp_forward.1} parent=11 // pred_region
        _
      $region32: #{mlp_forward.1} parent=11 // pred_fallthru
        _
      // Predicated region
      $region33: #{mlp_forward.1} parent=11 // pred_check
        %p221 = pneg %p165
      $region34: #{mlp_forward.1} parent=11 // pred_check_branch
        %223 = sbr.rel (%p221) target = $region36
      $region35: #{mlp_forward.1} parent=11 // pred_region
        _
      $region36: #{mlp_forward.1} parent=11 // pred_fallthru
        _
    $region12: #{mlp_forward.1} parent=5 // pred_fallthru
      _
    %p224 = scmp.lt.s32.totalorder %s13, 2
    // Predicated region
    $region37: #{mlp_forward.1} parent=5 // pred_check
      %p225 = pneg %p224
    $region38: #{mlp_forward.1} parent=5 // pred_check_branch
      %227 = sbr.rel (%p225) target = $region40
    $region39: #{mlp_forward.1} parent=5 // pred_region
      // Predicated region
      $region41: #{mlp_forward.1} parent=39 // pred_check
        %p228 = pneg %p33
      $region42: #{mlp_forward.1} parent=39 // pred_check_branch
        %230 = sbr.rel (%p228) target = $region44
      $region43: #{mlp_forward.1} parent=39 // pred_region
        %s231 = smul.u32 64, %s13
        %p232 = scmp.lt.s32.totalorder %s231, 127
        %s233 = scalar_select %p232, %s231, 127
        %s234 = smul.addr %s233, 8
        %s235 = scalar_lea.vmem %s0, %s234
        %s236 = smul.u32 64, %s13
      $region44: #{mlp_forward.1} parent=39 // pred_fallthru
        _
    $region40: #{mlp_forward.1} parent=5 // pred_fallthru
      _
    %p237 = scmp.le.s32.totalorder 1, %s13
    %p238 = scmp.lt.s32.totalorder %s13, 3
    %p239 = pnand %p237, %p238
    %p240 = pneg %p239
    // Predicated region
    $region45: #{mlp_forward.1} parent=5 // pred_check
      _
    $region46: #{mlp_forward.1} parent=5 // pred_check_branch
      %242 = sbr.rel (%p239) target = $region48
    $region47: #{mlp_forward.1} parent=5 // pred_region
      %s243 = ssub.s32 %s13, 1
      %s244 = smul.u32 64, %s18
      %p245 = scmp.lt.s32.totalorder %s244, 127
      %s246 = scalar_select %p245, %s244, 127
      %s247 = smul.addr %s246, 8
      %s248 = scalar_lea.vmem %s0, %s247
      %p249 = pneg %p39
      %p250 = pneg %p36
      %p251 = pneg %p60
      %p252 = pneg %p57
      %p253 = pneg %p81
      %p254 = pneg %p78
      %p255 = pneg %p102
      %p256 = pneg %p99
      %p257 = pneg %p123
      %p258 = pneg %p120
      %p259 = pneg %p144
      %p260 = pneg %p141
      %p261 = pneg %p165
      %p262 = pneg %p162
      %p263 = pneg %p191
      %p264 = pneg %p188
      %s265 = smul.u32 64, %s18
      %p266 = scmp.lt.s32.totalorder %s265, 127
      %s267 = scalar_select %p266, %s265, 127
      %s268 = smul.addr %s267, 8
      %s269 = scalar_lea.vmem %s7, %s268
      %s270 = smul.u32 64, %s18
      %p271 = scmp.lt.s32.totalorder %s270, 127
      %s272 = scalar_select %p271, %s270, 127
      %s273 = smul.addr %s272, 8
      %s274 = scalar_lea.vmem %s0, %s273
      %s275 = smul.u32 64, %s18
      %s276 = smul.u32 64, %s18
      %p277 = scmp.lt.s32.totalorder %s276, 127
      %s278 = scalar_select %p277, %s276, 127
      %s279 = smul.addr %s278, 8
      %s280 = scalar_lea.vmem %s7, %s279
      %s281 = smul.u32 64, %s18
      %v283 = vld [vmem:[%s274] sm:$0xff]
      %v284 = vld [vmem:[%s274 + $0x8] sm:$0xff]
      %v285 = vld [vmem:[%s274 + $0x10] sm:$0xff]
      %v286 = vld [vmem:[%s274 + $0x18] sm:$0xff]
      %v287 = vld [vmem:[%s274 + $0x20] sm:$0xff]
      %v288 = vld [vmem:[%s274 + $0x28] sm:$0xff]
      %v289 = vld [vmem:[%s274 + $0x30] sm:$0xff]
      %v290 = vld [vmem:[%s274 + $0x38] sm:$0xff]
      %v291 = vld [vmem:[%s274 + $0x40] sm:$0xff]
      %v292 = vld [vmem:[%s274 + $0x48] sm:$0xff]
      %v293 = vld [vmem:[%s274 + $0x50] sm:$0xff]
      %v294 = vld [vmem:[%s274 + $0x58] sm:$0xff]
      %v295 = vld [vmem:[%s274 + $0x60] sm:$0xff]
      %v296 = vld [vmem:[%s274 + $0x68] sm:$0xff]
      %v297 = vld [vmem:[%s274 + $0x70] sm:$0xff]
      %v298 = vld [vmem:[%s274 + $0x78] sm:$0xff]
      %v299 = vld [vmem:[%s274 + $0x80] sm:$0xff]
      %v300 = vld [vmem:[%s274 + $0x88] sm:$0xff]
      %v301 = vld [vmem:[%s274 + $0x90] sm:$0xff]
      %v302 = vld [vmem:[%s274 + $0x98] sm:$0xff]
      %v303 = vld [vmem:[%s274 + $0xa0] sm:$0xff]
      %v304 = vld [vmem:[%s274 + $0xa8] sm:$0xff]
      %v305 = vld [vmem:[%s274 + $0xb0] sm:$0xff]
      %v306 = vld [vmem:[%s274 + $0xb8] sm:$0xff]
      %v307 = vld [vmem:[%s274 + $0xc0] sm:$0xff]
      %v308 = vld [vmem:[%s274 + $0xc8] sm:$0xff]
      %v309 = vld [vmem:[%s274 + $0xd0] sm:$0xff]
      %v310 = vld [vmem:[%s274 + $0xd8] sm:$0xff]
      %v311 = vld [vmem:[%s274 + $0xe0] sm:$0xff]
      %v312 = vld [vmem:[%s274 + $0xe8] sm:$0xff]
      %v313 = vld [vmem:[%s274 + $0xf0] sm:$0xff]
      %v314 = vld [vmem:[%s274 + $0xf8] sm:$0xff]
      %v315 = vld [vmem:[%s274 + $0x100] sm:$0xff]
      %v316 = vld [vmem:[%s274 + $0x108] sm:$0xff]
      %v317 = vld [vmem:[%s274 + $0x110] sm:$0xff]
      %v318 = vld [vmem:[%s274 + $0x118] sm:$0xff]
      %v319 = vld [vmem:[%s274 + $0x120] sm:$0xff]
      %v320 = vld [vmem:[%s274 + $0x128] sm:$0xff]
      %v321 = vld [vmem:[%s274 + $0x130] sm:$0xff]
      %v322 = vld [vmem:[%s274 + $0x138] sm:$0xff]
      %v323 = vld [vmem:[%s274 + $0x140] sm:$0xff]
      %v324 = vld [vmem:[%s274 + $0x148] sm:$0xff]
      %v325 = vld [vmem:[%s274 + $0x150] sm:$0xff]
      %v326 = vld [vmem:[%s274 + $0x158] sm:$0xff]
      %v327 = vld [vmem:[%s274 + $0x160] sm:$0xff]
      %v328 = vld [vmem:[%s274 + $0x168] sm:$0xff]
      %v329 = vld [vmem:[%s274 + $0x170] sm:$0xff]
      %v330 = vld [vmem:[%s274 + $0x178] sm:$0xff]
      %v331 = vld [vmem:[%s274 + $0x180] sm:$0xff]
      %v332 = vld [vmem:[%s274 + $0x188] sm:$0xff]
      %v333 = vld [vmem:[%s274 + $0x190] sm:$0xff]
      %v334 = vld [vmem:[%s274 + $0x198] sm:$0xff]
      %v335 = vld [vmem:[%s274 + $0x1a0] sm:$0xff]
      %v336 = vld [vmem:[%s274 + $0x1a8] sm:$0xff]
      %v337 = vld [vmem:[%s274 + $0x1b0] sm:$0xff]
      %v338 = vld [vmem:[%s274 + $0x1b8] sm:$0xff]
      %v339 = vld [vmem:[%s274 + $0x1c0] sm:$0xff]
      %v340 = vld [vmem:[%s274 + $0x1c8] sm:$0xff]
      %v341 = vld [vmem:[%s274 + $0x1d0] sm:$0xff]
      %v342 = vld [vmem:[%s274 + $0x1d8] sm:$0xff]
      %v343 = vld [vmem:[%s274 + $0x1e0] sm:$0xff]
      %v344 = vld [vmem:[%s274 + $0x1e8] sm:$0xff]
      %v345 = vld [vmem:[%s274 + $0x1f0] sm:$0xff]
      %v346 = vld [vmem:[%s274 + $0x1f8] sm:$0xff]
      %v347 = vpack.c.bf16 %v284, %v283
      %v348 = vpack.c.bf16 %v286, %v285
      %v349 = vpack.c.bf16 %v288, %v287
      %v350 = vpack.c.bf16 %v290, %v289
      %v351 = vpack.c.bf16 %v292, %v291
      %v352 = vpack.c.bf16 %v294, %v293
      %v353 = vpack.c.bf16 %v296, %v295
      %v354 = vpack.c.bf16 %v298, %v297
      %v355 = vpack.c.bf16 %v300, %v299
      %v356 = vpack.c.bf16 %v302, %v301
      %v357 = vpack.c.bf16 %v304, %v303
      %v358 = vpack.c.bf16 %v306, %v305
      %v359 = vpack.c.bf16 %v308, %v307
      %v360 = vpack.c.bf16 %v310, %v309
      %v361 = vpack.c.bf16 %v312, %v311
      %v362 = vpack.c.bf16 %v314, %v313
      %v363 = vpack.c.bf16 %v316, %v315
      %v364 = vpack.c.bf16 %v318, %v317
      %v365 = vpack.c.bf16 %v320, %v319
      %v366 = vpack.c.bf16 %v322, %v321
      %v367 = vpack.c.bf16 %v324, %v323
      %v368 = vpack.c.bf16 %v326, %v325
      %v369 = vpack.c.bf16 %v328, %v327
      %v370 = vpack.c.bf16 %v330, %v329
      %v371 = vpack.c.bf16 %v332, %v331
      %v372 = vpack.c.bf16 %v334, %v333
      %v373 = vpack.c.bf16 %v336, %v335
      %v374 = vpack.c.bf16 %v338, %v337
      %v375 = vpack.c.bf16 %v340, %v339
      %v376 = vpack.c.bf16 %v342, %v341
      %v377 = vpack.c.bf16 %v344, %v343
      %v378 = vpack.c.bf16 %v346, %v345
      %v379 = vld [vmem:[%s1] sm:$0xf]
      %v380 = vld [vmem:[%s1 + $0x4] sm:$0xf]
      %v381 = vld [vmem:[%s1 + $0x8] sm:$0xf]
      %v382 = vld [vmem:[%s1 + $0xc] sm:$0xf]
      %v383 = vld [vmem:[%s2] sm:$0x1]
      %v385 = vperm.slane %v383, 0
      %v391 = vunpack.c.l.b16 %v379
      %v392 = vunpack.c.l.b16 %v380
      %v393 = vunpack.c.l.b16 %v381
      %v394 = vunpack.c.l.b16 %v382
      %v395 = vpack.c.b16 %v392, %v391
      %v396 = vpack.c.b16 %v394, %v393
      %vm399 = vcmask 261120
      %v401 = vsel %vm399, %v347, 0
      %v404 = vsel %vm399, %v348, 0
      %v407 = vsel %vm399, %v349, 0
      %v410 = vsel %vm399, %v350, 0
      %v413 = vsel %vm399, %v351, 0
      %v416 = vsel %vm399, %v352, 0
      %v419 = vsel %vm399, %v353, 0
      %v422 = vsel %vm399, %v354, 0
      %v425 = vsel %vm399, %v355, 0
      %v428 = vsel %vm399, %v356, 0
      %v431 = vsel %vm399, %v357, 0
      %v434 = vsel %vm399, %v358, 0
      %v437 = vsel %vm399, %v359, 0
      %v440 = vsel %vm399, %v360, 0
      %v443 = vsel %vm399, %v361, 0
      %v446 = vsel %vm399, %v362, 0
      %v449 = vsel %vm399, %v363, 0
      %v452 = vsel %vm399, %v364, 0
      %v455 = vsel %vm399, %v365, 0
      %v458 = vsel %vm399, %v366, 0
      %v461 = vsel %vm399, %v367, 0
      %v464 = vsel %vm399, %v368, 0
      %v467 = vsel %vm399, %v369, 0
      %v470 = vsel %vm399, %v370, 0
      %v473 = vsel %vm399, %v371, 0
      %v476 = vsel %vm399, %v372, 0
      %v479 = vsel %vm399, %v373, 0
      %v482 = vsel %vm399, %v374, 0
      %v485 = vsel %vm399, %v375, 0
      %v488 = vsel %vm399, %v376, 0
      %v491 = vsel %vm399, %v377, 0
      %v494 = vsel %vm399, %v378, 0
      %496 = vmatpush.bf16.msra.mxu0 0
      %497 = vmatpush.bf16.msra.mxu0 0
      %498 = vmatpush.bf16.msra.mxu0 0
      %499 = vmatpush.bf16.msra.mxu0 0
      %500 = vmatpush.bf16.msra.mxu0 0
      %501 = vmatpush.bf16.msra.mxu0 0
      %502 = vmatpush.bf16.msra.mxu0 %v396
      %503 = vmatpush.bf16.msra.mxu0 %v395
      %504 = vmatmul.bf16.gmra.mxu0 %v401
      %v505 = vpop.f32.mrf.mxu0
      %v506 = vadd.f32 %v385, %v505
      %v507 = vpop.f32.mrf.mxu0
      %v508 = vadd.f32 %v385, %v507
      %509 = vmatmul.bf16.gmra.mxu0 %v404
      %v510 = vpop.f32.mrf.mxu0
      %v511 = vadd.f32 %v385, %v510
      %v512 = vpop.f32.mrf.mxu0
      %v513 = vadd.f32 %v385, %v512
      %514 = vmatmul.bf16.gmra.mxu0 %v407
      %v515 = vpop.f32.mrf.mxu0
      %v516 = vadd.f32 %v385, %v515
      %v517 = vpop.f32.mrf.mxu0
      %v518 = vadd.f32 %v385, %v517
      %519 = vmatmul.bf16.gmra.mxu0 %v410
      %v520 = vpop.f32.mrf.mxu0
      %v521 = vadd.f32 %v385, %v520
      %v522 = vpop.f32.mrf.mxu0
      %v523 = vadd.f32 %v385, %v522
      %524 = vmatmul.bf16.gmra.mxu0 %v413
      %v525 = vpop.f32.mrf.mxu0
      %v526 = vadd.f32 %v385, %v525
      %v527 = vpop.f32.mrf.mxu0
      %v528 = vadd.f32 %v385, %v527
      %529 = vmatmul.bf16.gmra.mxu0 %v416
      %v530 = vpop.f32.mrf.mxu0
      %v531 = vadd.f32 %v385, %v530
      %v532 = vpop.f32.mrf.mxu0
      %v533 = vadd.f32 %v385, %v532
      %534 = vmatmul.bf16.gmra.mxu0 %v419
      %v535 = vpop.f32.mrf.mxu0
      %v536 = vadd.f32 %v385, %v535
      %v537 = vpop.f32.mrf.mxu0
      %v538 = vadd.f32 %v385, %v537
      %539 = vmatmul.bf16.gmra.mxu0 %v422
      %v540 = vpop.f32.mrf.mxu0
      %v541 = vadd.f32 %v385, %v540
      %v542 = vpop.f32.mrf.mxu0
      %v543 = vadd.f32 %v385, %v542
      %544 = vmatmul.bf16.gmra.mxu0 %v425
      %v545 = vpop.f32.mrf.mxu0
      %v546 = vadd.f32 %v385, %v545
      %v547 = vpop.f32.mrf.mxu0
      %v548 = vadd.f32 %v385, %v547
      %549 = vmatmul.bf16.gmra.mxu0 %v428
      %v550 = vpop.f32.mrf.mxu0
      %v551 = vadd.f32 %v385, %v550
      %v552 = vpop.f32.mrf.mxu0
      %v553 = vadd.f32 %v385, %v552
      %554 = vmatmul.bf16.gmra.mxu0 %v431
      %v555 = vpop.f32.mrf.mxu0
      %v556 = vadd.f32 %v385, %v555
      %v557 = vpop.f32.mrf.mxu0
      %v558 = vadd.f32 %v385, %v557
      %559 = vmatmul.bf16.gmra.mxu0 %v434
      %v560 = vpop.f32.mrf.mxu0
      %v561 = vadd.f32 %v385, %v560
      %v562 = vpop.f32.mrf.mxu0
      %v563 = vadd.f32 %v385, %v562
      %564 = vmatmul.bf16.gmra.mxu0 %v437
      %v565 = vpop.f32.mrf.mxu0
      %v566 = vadd.f32 %v385, %v565
      %v567 = vpop.f32.mrf.mxu0
      %v568 = vadd.f32 %v385, %v567
      %569 = vmatmul.bf16.gmra.mxu0 %v440
      %v570 = vpop.f32.mrf.mxu0
      %v571 = vadd.f32 %v385, %v570
      %v572 = vpop.f32.mrf.mxu0
      %v573 = vadd.f32 %v385, %v572
      %574 = vmatmul.bf16.gmra.mxu0 %v443
      %v575 = vpop.f32.mrf.mxu0
      %v576 = vadd.f32 %v385, %v575
      %v577 = vpop.f32.mrf.mxu0
      %v578 = vadd.f32 %v385, %v577
      %579 = vmatmul.bf16.gmra.mxu0 %v446
      %v580 = vpop.f32.mrf.mxu0
      %v581 = vadd.f32 %v385, %v580
      %v582 = vpop.f32.mrf.mxu0
      %v583 = vadd.f32 %v385, %v582
      %584 = vmatmul.bf16.gmra.mxu0 %v449
      %v585 = vpop.f32.mrf.mxu0
      %v586 = vadd.f32 %v385, %v585
      %v587 = vpop.f32.mrf.mxu0
      %v588 = vadd.f32 %v385, %v587
      %589 = vmatmul.bf16.gmra.mxu0 %v452
      %v590 = vpop.f32.mrf.mxu0
      %v591 = vadd.f32 %v385, %v590
      %v592 = vpop.f32.mrf.mxu0
      %v593 = vadd.f32 %v385, %v592
      %594 = vmatmul.bf16.gmra.mxu0 %v455
      %v595 = vpop.f32.mrf.mxu0
      %v596 = vadd.f32 %v385, %v595
      %v597 = vpop.f32.mrf.mxu0
      %v598 = vadd.f32 %v385, %v597
      %599 = vmatmul.bf16.gmra.mxu0 %v458
      %v600 = vpop.f32.mrf.mxu0
      %v601 = vadd.f32 %v385, %v600
      %v602 = vpop.f32.mrf.mxu0
      %v603 = vadd.f32 %v385, %v602
      %604 = vmatmul.bf16.gmra.mxu0 %v461
      %v605 = vpop.f32.mrf.mxu0
      %v606 = vadd.f32 %v385, %v605
      %v607 = vpop.f32.mrf.mxu0
      %v608 = vadd.f32 %v385, %v607
      %609 = vmatmul.bf16.gmra.mxu0 %v464
      %v610 = vpop.f32.mrf.mxu0
      %v611 = vadd.f32 %v385, %v610
      %v612 = vpop.f32.mrf.mxu0
      %v613 = vadd.f32 %v385, %v612
      %614 = vmatmul.bf16.gmra.mxu0 %v467
      %v615 = vpop.f32.mrf.mxu0
      %v616 = vadd.f32 %v385, %v615
      %v617 = vpop.f32.mrf.mxu0
      %v618 = vadd.f32 %v385, %v617
      %619 = vmatmul.bf16.gmra.mxu0 %v470
      %v620 = vpop.f32.mrf.mxu0
      %v621 = vadd.f32 %v385, %v620
      %v622 = vpop.f32.mrf.mxu0
      %v623 = vadd.f32 %v385, %v622
      %624 = vmatmul.bf16.gmra.mxu0 %v473
      %v625 = vpop.f32.mrf.mxu0
      %v626 = vadd.f32 %v385, %v625
      %v627 = vpop.f32.mrf.mxu0
      %v628 = vadd.f32 %v385, %v627
      %629 = vmatmul.bf16.gmra.mxu0 %v476
      %v630 = vpop.f32.mrf.mxu0
      %v631 = vadd.f32 %v385, %v630
      %v632 = vpop.f32.mrf.mxu0
      %v633 = vadd.f32 %v385, %v632
      %634 = vmatmul.bf16.gmra.mxu0 %v479
      %v635 = vpop.f32.mrf.mxu0
      %v636 = vadd.f32 %v385, %v635
      %v637 = vpop.f32.mrf.mxu0
      %v638 = vadd.f32 %v385, %v637
      %639 = vmatmul.bf16.gmra.mxu0 %v482
      %v640 = vpop.f32.mrf.mxu0
      %v641 = vadd.f32 %v385, %v640
      %v642 = vpop.f32.mrf.mxu0
      %v643 = vadd.f32 %v385, %v642
      %644 = vmatmul.bf16.gmra.mxu0 %v485
      %v645 = vpop.f32.mrf.mxu0
      %v646 = vadd.f32 %v385, %v645
      %v647 = vpop.f32.mrf.mxu0
      %v648 = vadd.f32 %v385, %v647
      %649 = vmatmul.bf16.gmra.mxu0 %v488
      %v650 = vpop.f32.mrf.mxu0
      %v651 = vadd.f32 %v385, %v650
      %v652 = vpop.f32.mrf.mxu0
      %v653 = vadd.f32 %v385, %v652
      %654 = vmatmul.bf16.gmra.mxu0 %v491
      %v655 = vpop.f32.mrf.mxu0
      %v656 = vadd.f32 %v385, %v655
      %v657 = vpop.f32.mrf.mxu0
      %v658 = vadd.f32 %v385, %v657
      %659 = vmatmul.bf16.gmra.mxu0 %v494
      %v660 = vpop.f32.mrf.mxu0
      %v661 = vadd.f32 %v385, %v660
      %v662 = vpop.f32.mrf.mxu0
      %v663 = vadd.f32 %v385, %v662
      %664 = vdwg.mxu0
      %v665 = vmul.f32 %v506, 0.01
      %v666 = vmul.f32 %v508, 0.01
      %v667 = vmul.f32 %v511, 0.01
      %v668 = vmul.f32 %v513, 0.01
      %v669 = vmul.f32 %v516, 0.01
      %v670 = vmul.f32 %v518, 0.01
      %v671 = vmul.f32 %v521, 0.01
      %v672 = vmul.f32 %v523, 0.01
      %v673 = vmul.f32 %v526, 0.01
      %v674 = vmul.f32 %v528, 0.01
      %v675 = vmul.f32 %v531, 0.01
      %v676 = vmul.f32 %v533, 0.01
      %v677 = vmul.f32 %v536, 0.01
      %v678 = vmul.f32 %v538, 0.01
      %v679 = vmul.f32 %v541, 0.01
      %v680 = vmul.f32 %v543, 0.01
      %v681 = vmul.f32 %v546, 0.01
      %v682 = vmul.f32 %v548, 0.01
      %v683 = vmul.f32 %v551, 0.01
      %v684 = vmul.f32 %v553, 0.01
      %v685 = vmul.f32 %v556, 0.01
      %v686 = vmul.f32 %v558, 0.01
      %v687 = vmul.f32 %v561, 0.01
      %v688 = vmul.f32 %v563, 0.01
      %v689 = vmul.f32 %v566, 0.01
      %v690 = vmul.f32 %v568, 0.01
      %v691 = vmul.f32 %v571, 0.01
      %v692 = vmul.f32 %v573, 0.01
      %v693 = vmul.f32 %v576, 0.01
      %v694 = vmul.f32 %v578, 0.01
      %v695 = vmul.f32 %v581, 0.01
      %v696 = vmul.f32 %v583, 0.01
      %v697 = vmul.f32 %v586, 0.01
      %v698 = vmul.f32 %v588, 0.01
      %v699 = vmul.f32 %v591, 0.01
      %v700 = vmul.f32 %v593, 0.01
      %v701 = vmul.f32 %v596, 0.01
      %v702 = vmul.f32 %v598, 0.01
      %v703 = vmul.f32 %v601, 0.01
      %v704 = vmul.f32 %v603, 0.01
      %v705 = vmul.f32 %v606, 0.01
      %v706 = vmul.f32 %v608, 0.01
      %v707 = vmul.f32 %v611, 0.01
      %v708 = vmul.f32 %v613, 0.01
      %v709 = vmul.f32 %v616, 0.01
      %v710 = vmul.f32 %v618, 0.01
      %v711 = vmul.f32 %v621, 0.01
      %v712 = vmul.f32 %v623, 0.01
      %v713 = vmul.f32 %v626, 0.01
      %v714 = vmul.f32 %v628, 0.01
      %v715 = vmul.f32 %v631, 0.01
      %v716 = vmul.f32 %v633, 0.01
      %v717 = vmul.f32 %v636, 0.01
      %v718 = vmul.f32 %v638, 0.01
      %v719 = vmul.f32 %v641, 0.01
      %v720 = vmul.f32 %v643, 0.01
      %v721 = vmul.f32 %v646, 0.01
      %v722 = vmul.f32 %v648, 0.01
      %v723 = vmul.f32 %v651, 0.01
      %v724 = vmul.f32 %v653, 0.01
      %v725 = vmul.f32 %v656, 0.01
      %v726 = vmul.f32 %v658, 0.01
      %v727 = vmul.f32 %v661, 0.01
      %v728 = vmul.f32 %v663, 0.01
      %v729 = vmax.f32 %v506, %v665
      %v730 = vmax.f32 %v508, %v666
      %v731 = vmax.f32 %v511, %v667
      %v732 = vmax.f32 %v513, %v668
      %v733 = vmax.f32 %v516, %v669
      %v734 = vmax.f32 %v518, %v670
      %v735 = vmax.f32 %v521, %v671
      %v736 = vmax.f32 %v523, %v672
      %v737 = vmax.f32 %v526, %v673
      %v738 = vmax.f32 %v528, %v674
      %v739 = vmax.f32 %v531, %v675
      %v740 = vmax.f32 %v533, %v676
      %v741 = vmax.f32 %v536, %v677
      %v742 = vmax.f32 %v538, %v678
      %v743 = vmax.f32 %v541, %v679
      %v744 = vmax.f32 %v543, %v680
      %v745 = vmax.f32 %v546, %v681
      %v746 = vmax.f32 %v548, %v682
      %v747 = vmax.f32 %v551, %v683
      %v748 = vmax.f32 %v553, %v684
      %v749 = vmax.f32 %v556, %v685
      %v750 = vmax.f32 %v558, %v686
      %v751 = vmax.f32 %v561, %v687
      %v752 = vmax.f32 %v563, %v688
      %v753 = vmax.f32 %v566, %v689
      %v754 = vmax.f32 %v568, %v690
      %v755 = vmax.f32 %v571, %v691
      %v756 = vmax.f32 %v573, %v692
      %v757 = vmax.f32 %v576, %v693
      %v758 = vmax.f32 %v578, %v694
      %v759 = vmax.f32 %v581, %v695
      %v760 = vmax.f32 %v583, %v696
      %v761 = vmax.f32 %v586, %v697
      %v762 = vmax.f32 %v588, %v698
      %v763 = vmax.f32 %v591, %v699
      %v764 = vmax.f32 %v593, %v700
      %v765 = vmax.f32 %v596, %v701
      %v766 = vmax.f32 %v598, %v702
      %v767 = vmax.f32 %v601, %v703
      %v768 = vmax.f32 %v603, %v704
      %v769 = vmax.f32 %v606, %v705
      %v770 = vmax.f32 %v608, %v706
      %v771 = vmax.f32 %v611, %v707
      %v772 = vmax.f32 %v613, %v708
      %v773 = vmax.f32 %v616, %v709
      %v774 = vmax.f32 %v618, %v710
      %v775 = vmax.f32 %v621, %v711
      %v776 = vmax.f32 %v623, %v712
      %v777 = vmax.f32 %v626, %v713
      %v778 = vmax.f32 %v628, %v714
      %v779 = vmax.f32 %v631, %v715
      %v780 = vmax.f32 %v633, %v716
      %v781 = vmax.f32 %v636, %v717
      %v782 = vmax.f32 %v638, %v718
      %v783 = vmax.f32 %v641, %v719
      %v784 = vmax.f32 %v643, %v720
      %v785 = vmax.f32 %v646, %v721
      %v786 = vmax.f32 %v648, %v722
      %v787 = vmax.f32 %v651, %v723
      %v788 = vmax.f32 %v653, %v724
      %v789 = vmax.f32 %v656, %v725
      %v790 = vmax.f32 %v658, %v726
      %v791 = vmax.f32 %v661, %v727
      %v792 = vmax.f32 %v663, %v728
      %v793 = vpack.c.bf16 %v730, %v729
      %v794 = vpack.c.bf16 %v732, %v731
      %v795 = vpack.c.bf16 %v734, %v733
      %v796 = vpack.c.bf16 %v736, %v735
      %v797 = vpack.c.bf16 %v738, %v737
      %v798 = vpack.c.bf16 %v740, %v739
      %v799 = vpack.c.bf16 %v742, %v741
      %v800 = vpack.c.bf16 %v744, %v743
      %v801 = vpack.c.bf16 %v746, %v745
      %v802 = vpack.c.bf16 %v748, %v747
      %v803 = vpack.c.bf16 %v750, %v749
      %v804 = vpack.c.bf16 %v752, %v751
      %v805 = vpack.c.bf16 %v754, %v753
      %v806 = vpack.c.bf16 %v756, %v755
      %v807 = vpack.c.bf16 %v758, %v757
      %v808 = vpack.c.bf16 %v760, %v759
      %v809 = vpack.c.bf16 %v762, %v761
      %v810 = vpack.c.bf16 %v764, %v763
      %v811 = vpack.c.bf16 %v766, %v765
      %v812 = vpack.c.bf16 %v768, %v767
      %v813 = vpack.c.bf16 %v770, %v769
      %v814 = vpack.c.bf16 %v772, %v771
      %v815 = vpack.c.bf16 %v774, %v773
      %v816 = vpack.c.bf16 %v776, %v775
      %v817 = vpack.c.bf16 %v778, %v777
      %v818 = vpack.c.bf16 %v780, %v779
      %v819 = vpack.c.bf16 %v782, %v781
      %v820 = vpack.c.bf16 %v784, %v783
      %v821 = vpack.c.bf16 %v786, %v785
      %v822 = vpack.c.bf16 %v788, %v787
      %v823 = vpack.c.bf16 %v790, %v789
      %v824 = vpack.c.bf16 %v792, %v791
      %v825 = vld [vmem:[%s3] sm:$0xf]
      %v826 = vld [vmem:[%s3 + $0x4] sm:$0xf]
      %v827 = vld [vmem:[%s3 + $0x8] sm:$0xf]
      %v828 = vld [vmem:[%s3 + $0xc] sm:$0xf]
      %v829 = vld [vmem:[%s3 + $0x10] sm:$0xf]
      %v830 = vld [vmem:[%s3 + $0x14] sm:$0xf]
      %v831 = vld [vmem:[%s3 + $0x18] sm:$0xf]
      %v832 = vld [vmem:[%s3 + $0x1c] sm:$0xf]
      %v833 = vld [vmem:[%s4] sm:$0x1]
      %v835 = vperm.slane %v833, 0
      %v845 = vunpack.c.l.b16 %v825
      %v846 = vunpack.c.l.b16 %v826
      %v847 = vunpack.c.l.b16 %v827
      %v848 = vunpack.c.l.b16 %v828
      %v849 = vunpack.c.l.b16 %v829
      %v850 = vunpack.c.l.b16 %v830
      %v851 = vunpack.c.l.b16 %v831
      %v852 = vunpack.c.l.b16 %v832
      %v853 = vpack.c.b16 %v846, %v845
      %v854 = vpack.c.b16 %v848, %v847
      %v855 = vpack.c.b16 %v850, %v849
      %v856 = vpack.c.b16 %v852, %v851
      %vm861 = vcmask 523264
      %v863 = vsel %vm861, %v793, 0
      %v866 = vsel %vm861, %v794, 0
      %v869 = vsel %vm861, %v795, 0
      %v872 = vsel %vm861, %v796, 0
      %v875 = vsel %vm861, %v797, 0
      %v878 = vsel %vm861, %v798, 0
      %v881 = vsel %vm861, %v799, 0
      %v884 = vsel %vm861, %v800, 0
      %v887 = vsel %vm861, %v801, 0
      %v890 = vsel %vm861, %v802, 0
      %v893 = vsel %vm861, %v803, 0
      %v896 = vsel %vm861, %v804, 0
      %v899 = vsel %vm861, %v805, 0
      %v902 = vsel %vm861, %v806, 0
      %v905 = vsel %vm861, %v807, 0
      %v908 = vsel %vm861, %v808, 0
      %v911 = vsel %vm861, %v809, 0
      %v914 = vsel %vm861, %v810, 0
      %v917 = vsel %vm861, %v811, 0
      %v920 = vsel %vm861, %v812, 0
      %v923 = vsel %vm861, %v813, 0
      %v926 = vsel %vm861, %v814, 0
      %v929 = vsel %vm861, %v815, 0
      %v932 = vsel %vm861, %v816, 0
      %v935 = vsel %vm861, %v817, 0
      %v938 = vsel %vm861, %v818, 0
      %v941 = vsel %vm861, %v819, 0
      %v944 = vsel %vm861, %v820, 0
      %v947 = vsel %vm861, %v821, 0
      %v950 = vsel %vm861, %v822, 0
      %v953 = vsel %vm861, %v823, 0
      %v956 = vsel %vm861, %v824, 0
      %958 = vmatpush.bf16.msra.mxu0 0
      %959 = vmatpush.bf16.msra.mxu0 0
      %960 = vmatpush.bf16.msra.mxu0 0
      %961 = vmatpush.bf16.msra.mxu0 0
      %962 = vmatpush.bf16.msra.mxu0 %v856
      %963 = vmatpush.bf16.msra.mxu0 %v855
      %964 = vmatpush.bf16.msra.mxu0 %v854
      %965 = vmatpush.bf16.msra.mxu0 %v853
      %966 = vmatmul.bf16.gmra.mxu0 %v863
      %v967 = vpop.f32.mrf.mxu0
      %v968 = vadd.f32 %v835, %v967
      %v969 = vpop.f32.mrf.mxu0
      %v970 = vadd.f32 %v835, %v969
      %971 = vmatmul.bf16.gmra.mxu0 %v866
      %v972 = vpop.f32.mrf.mxu0
      %v973 = vadd.f32 %v835, %v972
      %v974 = vpop.f32.mrf.mxu0
      %v975 = vadd.f32 %v835, %v974
      %976 = vmatmul.bf16.gmra.mxu0 %v869
      %v977 = vpop.f32.mrf.mxu0
      %v978 = vadd.f32 %v835, %v977
      %v979 = vpop.f32.mrf.mxu0
      %v980 = vadd.f32 %v835, %v979
      %981 = vmatmul.bf16.gmra.mxu0 %v872
      %v982 = vpop.f32.mrf.mxu0
      %v983 = vadd.f32 %v835, %v982
      %v984 = vpop.f32.mrf.mxu0
      %v985 = vadd.f32 %v835, %v984
      %986 = vmatmul.bf16.gmra.mxu0 %v875
      %v987 = vpop.f32.mrf.mxu0
      %v988 = vadd.f32 %v835, %v987
      %v989 = vpop.f32.mrf.mxu0
      %v990 = vadd.f32 %v835, %v989
      %991 = vmatmul.bf16.gmra.mxu0 %v878
      %v992 = vpop.f32.mrf.mxu0
      %v993 = vadd.f32 %v835, %v992
      %v994 = vpop.f32.mrf.mxu0
      %v995 = vadd.f32 %v835, %v994
      %996 = vmatmul.bf16.gmra.mxu0 %v881
      %v997 = vpop.f32.mrf.mxu0
      %v998 = vadd.f32 %v835, %v997
      %v999 = vpop.f32.mrf.mxu0
      %v1000 = vadd.f32 %v835, %v999
      %1001 = vmatmul.bf16.gmra.mxu0 %v884
      %v1002 = vpop.f32.mrf.mxu0
      %v1003 = vadd.f32 %v835, %v1002
      %v1004 = vpop.f32.mrf.mxu0
      %v1005 = vadd.f32 %v835, %v1004
      %1006 = vmatmul.bf16.gmra.mxu0 %v887
      %v1007 = vpop.f32.mrf.mxu0
      %v1008 = vadd.f32 %v835, %v1007
      %v1009 = vpop.f32.mrf.mxu0
      %v1010 = vadd.f32 %v835, %v1009
      %1011 = vmatmul.bf16.gmra.mxu0 %v890
      %v1012 = vpop.f32.mrf.mxu0
      %v1013 = vadd.f32 %v835, %v1012
      %v1014 = vpop.f32.mrf.mxu0
      %v1015 = vadd.f32 %v835, %v1014
      %1016 = vmatmul.bf16.gmra.mxu0 %v893
      %v1017 = vpop.f32.mrf.mxu0
      %v1018 = vadd.f32 %v835, %v1017
      %v1019 = vpop.f32.mrf.mxu0
      %v1020 = vadd.f32 %v835, %v1019
      %1021 = vmatmul.bf16.gmra.mxu0 %v896
      %v1022 = vpop.f32.mrf.mxu0
      %v1023 = vadd.f32 %v835, %v1022
      %v1024 = vpop.f32.mrf.mxu0
      %v1025 = vadd.f32 %v835, %v1024
      %1026 = vmatmul.bf16.gmra.mxu0 %v899
      %v1027 = vpop.f32.mrf.mxu0
      %v1028 = vadd.f32 %v835, %v1027
      %v1029 = vpop.f32.mrf.mxu0
      %v1030 = vadd.f32 %v835, %v1029
      %1031 = vmatmul.bf16.gmra.mxu0 %v902
      %v1032 = vpop.f32.mrf.mxu0
      %v1033 = vadd.f32 %v835, %v1032
      %v1034 = vpop.f32.mrf.mxu0
      %v1035 = vadd.f32 %v835, %v1034
      %1036 = vmatmul.bf16.gmra.mxu0 %v905
      %v1037 = vpop.f32.mrf.mxu0
      %v1038 = vadd.f32 %v835, %v1037
      %v1039 = vpop.f32.mrf.mxu0
      %v1040 = vadd.f32 %v835, %v1039
      %1041 = vmatmul.bf16.gmra.mxu0 %v908
      %v1042 = vpop.f32.mrf.mxu0
      %v1043 = vadd.f32 %v835, %v1042
      %v1044 = vpop.f32.mrf.mxu0
      %v1045 = vadd.f32 %v835, %v1044
      %1046 = vmatmul.bf16.gmra.mxu0 %v911
      %v1047 = vpop.f32.mrf.mxu0
      %v1048 = vadd.f32 %v835, %v1047
      %v1049 = vpop.f32.mrf.mxu0
      %v1050 = vadd.f32 %v835, %v1049
      %1051 = vmatmul.bf16.gmra.mxu0 %v914
      %v1052 = vpop.f32.mrf.mxu0
      %v1053 = vadd.f32 %v835, %v1052
      %v1054 = vpop.f32.mrf.mxu0
      %v1055 = vadd.f32 %v835, %v1054
      %1056 = vmatmul.bf16.gmra.mxu0 %v917
      %v1057 = vpop.f32.mrf.mxu0
      %v1058 = vadd.f32 %v835, %v1057
      %v1059 = vpop.f32.mrf.mxu0
      %v1060 = vadd.f32 %v835, %v1059
      %1061 = vmatmul.bf16.gmra.mxu0 %v920
      %v1062 = vpop.f32.mrf.mxu0
      %v1063 = vadd.f32 %v835, %v1062
      %v1064 = vpop.f32.mrf.mxu0
      %v1065 = vadd.f32 %v835, %v1064
      %1066 = vmatmul.bf16.gmra.mxu0 %v923
      %v1067 = vpop.f32.mrf.mxu0
      %v1068 = vadd.f32 %v835, %v1067
      %v1069 = vpop.f32.mrf.mxu0
      %v1070 = vadd.f32 %v835, %v1069
      %1071 = vmatmul.bf16.gmra.mxu0 %v926
      %v1072 = vpop.f32.mrf.mxu0
      %v1073 = vadd.f32 %v835, %v1072
      %v1074 = vpop.f32.mrf.mxu0
      %v1075 = vadd.f32 %v835, %v1074
      %1076 = vmatmul.bf16.gmra.mxu0 %v929
      %v1077 = vpop.f32.mrf.mxu0
      %v1078 = vadd.f32 %v835, %v1077
      %v1079 = vpop.f32.mrf.mxu0
      %v1080 = vadd.f32 %v835, %v1079
      %1081 = vmatmul.bf16.gmra.mxu0 %v932
      %v1082 = vpop.f32.mrf.mxu0
      %v1083 = vadd.f32 %v835, %v1082
      %v1084 = vpop.f32.mrf.mxu0
      %v1085 = vadd.f32 %v835, %v1084
      %1086 = vmatmul.bf16.gmra.mxu0 %v935
      %v1087 = vpop.f32.mrf.mxu0
      %v1088 = vadd.f32 %v835, %v1087
      %v1089 = vpop.f32.mrf.mxu0
      %v1090 = vadd.f32 %v835, %v1089
      %1091 = vmatmul.bf16.gmra.mxu0 %v938
      %v1092 = vpop.f32.mrf.mxu0
      %v1093 = vadd.f32 %v835, %v1092
      %v1094 = vpop.f32.mrf.mxu0
      %v1095 = vadd.f32 %v835, %v1094
      %1096 = vmatmul.bf16.gmra.mxu0 %v941
      %v1097 = vpop.f32.mrf.mxu0
      %v1098 = vadd.f32 %v835, %v1097
      %v1099 = vpop.f32.mrf.mxu0
      %v1100 = vadd.f32 %v835, %v1099
      %1101 = vmatmul.bf16.gmra.mxu0 %v944
      %v1102 = vpop.f32.mrf.mxu0
      %v1103 = vadd.f32 %v835, %v1102
      %v1104 = vpop.f32.mrf.mxu0
      %v1105 = vadd.f32 %v835, %v1104
      %1106 = vmatmul.bf16.gmra.mxu0 %v947
      %v1107 = vpop.f32.mrf.mxu0
      %v1108 = vadd.f32 %v835, %v1107
      %v1109 = vpop.f32.mrf.mxu0
      %v1110 = vadd.f32 %v835, %v1109
      %1111 = vmatmul.bf16.gmra.mxu0 %v950
      %v1112 = vpop.f32.mrf.mxu0
      %v1113 = vadd.f32 %v835, %v1112
      %v1114 = vpop.f32.mrf.mxu0
      %v1115 = vadd.f32 %v835, %v1114
      %1116 = vmatmul.bf16.gmra.mxu0 %v953
      %v1117 = vpop.f32.mrf.mxu0
      %v1118 = vadd.f32 %v835, %v1117
      %v1119 = vpop.f32.mrf.mxu0
      %v1120 = vadd.f32 %v835, %v1119
      %1121 = vmatmul.bf16.gmra.mxu0 %v956
      %v1122 = vpop.f32.mrf.mxu0
      %v1123 = vadd.f32 %v835, %v1122
      %v1124 = vpop.f32.mrf.mxu0
      %v1125 = vadd.f32 %v835, %v1124
      %1126 = vdwg.mxu0
      %v1127 = vmul.f32 %v968, 0.01
      %v1128 = vmul.f32 %v970, 0.01
      %v1129 = vmul.f32 %v973, 0.01
      %v1130 = vmul.f32 %v975, 0.01
      %v1131 = vmul.f32 %v978, 0.01
      %v1132 = vmul.f32 %v980, 0.01
      %v1133 = vmul.f32 %v983, 0.01
      %v1134 = vmul.f32 %v985, 0.01
      %v1135 = vmul.f32 %v988, 0.01
      %v1136 = vmul.f32 %v990, 0.01
      %v1137 = vmul.f32 %v993, 0.01
      %v1138 = vmul.f32 %v995, 0.01
      %v1139 = vmul.f32 %v998, 0.01
      %v1140 = vmul.f32 %v1000, 0.01
      %v1141 = vmul.f32 %v1003, 0.01
      %v1142 = vmul.f32 %v1005, 0.01
      %v1143 = vmul.f32 %v1008, 0.01
      %v1144 = vmul.f32 %v1010, 0.01
      %v1145 = vmul.f32 %v1013, 0.01
      %v1146 = vmul.f32 %v1015, 0.01
      %v1147 = vmul.f32 %v1018, 0.01
      %v1148 = vmul.f32 %v1020, 0.01
      %v1149 = vmul.f32 %v1023, 0.01
      %v1150 = vmul.f32 %v1025, 0.01
      %v1151 = vmul.f32 %v1028, 0.01
      %v1152 = vmul.f32 %v1030, 0.01
      %v1153 = vmul.f32 %v1033, 0.01
      %v1154 = vmul.f32 %v1035, 0.01
      %v1155 = vmul.f32 %v1038, 0.01
      %v1156 = vmul.f32 %v1040, 0.01
      %v1157 = vmul.f32 %v1043, 0.01
      %v1158 = vmul.f32 %v1045, 0.01
      %v1159 = vmul.f32 %v1048, 0.01
      %v1160 = vmul.f32 %v1050, 0.01
      %v1161 = vmul.f32 %v1053, 0.01
      %v1162 = vmul.f32 %v1055, 0.01
      %v1163 = vmul.f32 %v1058, 0.01
      %v1164 = vmul.f32 %v1060, 0.01
      %v1165 = vmul.f32 %v1063, 0.01
      %v1166 = vmul.f32 %v1065, 0.01
      %v1167 = vmul.f32 %v1068, 0.01
      %v1168 = vmul.f32 %v1070, 0.01
      %v1169 = vmul.f32 %v1073, 0.01
      %v1170 = vmul.f32 %v1075, 0.01
      %v1171 = vmul.f32 %v1078, 0.01
      %v1172 = vmul.f32 %v1080, 0.01
      %v1173 = vmul.f32 %v1083, 0.01
      %v1174 = vmul.f32 %v1085, 0.01
      %v1175 = vmul.f32 %v1088, 0.01
      %v1176 = vmul.f32 %v1090, 0.01
      %v1177 = vmul.f32 %v1093, 0.01
      %v1178 = vmul.f32 %v1095, 0.01
      %v1179 = vmul.f32 %v1098, 0.01
      %v1180 = vmul.f32 %v1100, 0.01
      %v1181 = vmul.f32 %v1103, 0.01
      %v1182 = vmul.f32 %v1105, 0.01
      %v1183 = vmul.f32 %v1108, 0.01
      %v1184 = vmul.f32 %v1110, 0.01
      %v1185 = vmul.f32 %v1113, 0.01
      %v1186 = vmul.f32 %v1115, 0.01
      %v1187 = vmul.f32 %v1118, 0.01
      %v1188 = vmul.f32 %v1120, 0.01
      %v1189 = vmul.f32 %v1123, 0.01
      %v1190 = vmul.f32 %v1125, 0.01
      %v1191 = vmax.f32 %v968, %v1127
      %v1192 = vmax.f32 %v970, %v1128
      %v1193 = vmax.f32 %v973, %v1129
      %v1194 = vmax.f32 %v975, %v1130
      %v1195 = vmax.f32 %v978, %v1131
      %v1196 = vmax.f32 %v980, %v1132
      %v1197 = vmax.f32 %v983, %v1133
      %v1198 = vmax.f32 %v985, %v1134
      %v1199 = vmax.f32 %v988, %v1135
      %v1200 = vmax.f32 %v990, %v1136
      %v1201 = vmax.f32 %v993, %v1137
      %v1202 = vmax.f32 %v995, %v1138
      %v1203 = vmax.f32 %v998, %v1139
      %v1204 = vmax.f32 %v1000, %v1140
      %v1205 = vmax.f32 %v1003, %v1141
      %v1206 = vmax.f32 %v1005, %v1142
      %v1207 = vmax.f32 %v1008, %v1143
      %v1208 = vmax.f32 %v1010, %v1144
      %v1209 = vmax.f32 %v1013, %v1145
      %v1210 = vmax.f32 %v1015, %v1146
      %v1211 = vmax.f32 %v1018, %v1147
      %v1212 = vmax.f32 %v1020, %v1148
      %v1213 = vmax.f32 %v1023, %v1149
      %v1214 = vmax.f32 %v1025, %v1150
      %v1215 = vmax.f32 %v1028, %v1151
      %v1216 = vmax.f32 %v1030, %v1152
      %v1217 = vmax.f32 %v1033, %v1153
      %v1218 = vmax.f32 %v1035, %v1154
      %v1219 = vmax.f32 %v1038, %v1155
      %v1220 = vmax.f32 %v1040, %v1156
      %v1221 = vmax.f32 %v1043, %v1157
      %v1222 = vmax.f32 %v1045, %v1158
      %v1223 = vmax.f32 %v1048, %v1159
      %v1224 = vmax.f32 %v1050, %v1160
      %v1225 = vmax.f32 %v1053, %v1161
      %v1226 = vmax.f32 %v1055, %v1162
      %v1227 = vmax.f32 %v1058, %v1163
      %v1228 = vmax.f32 %v1060, %v1164
      %v1229 = vmax.f32 %v1063, %v1165
      %v1230 = vmax.f32 %v1065, %v1166
      %v1231 = vmax.f32 %v1068, %v1167
      %v1232 = vmax.f32 %v1070, %v1168
      %v1233 = vmax.f32 %v1073, %v1169
      %v1234 = vmax.f32 %v1075, %v1170
      %v1235 = vmax.f32 %v1078, %v1171
      %v1236 = vmax.f32 %v1080, %v1172
      %v1237 = vmax.f32 %v1083, %v1173
      %v1238 = vmax.f32 %v1085, %v1174
      %v1239 = vmax.f32 %v1088, %v1175
      %v1240 = vmax.f32 %v1090, %v1176
      %v1241 = vmax.f32 %v1093, %v1177
      %v1242 = vmax.f32 %v1095, %v1178
      %v1243 = vmax.f32 %v1098, %v1179
      %v1244 = vmax.f32 %v1100, %v1180
      %v1245 = vmax.f32 %v1103, %v1181
      %v1246 = vmax.f32 %v1105, %v1182
      %v1247 = vmax.f32 %v1108, %v1183
      %v1248 = vmax.f32 %v1110, %v1184
      %v1249 = vmax.f32 %v1113, %v1185
      %v1250 = vmax.f32 %v1115, %v1186
      %v1251 = vmax.f32 %v1118, %v1187
      %v1252 = vmax.f32 %v1120, %v1188
      %v1253 = vmax.f32 %v1123, %v1189
      %v1254 = vmax.f32 %v1125, %v1190
      %v1255 = vpack.c.bf16 %v1192, %v1191
      %v1256 = vpack.c.bf16 %v1194, %v1193
      %v1257 = vpack.c.bf16 %v1196, %v1195
      %v1258 = vpack.c.bf16 %v1198, %v1197
      %v1259 = vpack.c.bf16 %v1200, %v1199
      %v1260 = vpack.c.bf16 %v1202, %v1201
      %v1261 = vpack.c.bf16 %v1204, %v1203
      %v1262 = vpack.c.bf16 %v1206, %v1205
      %v1263 = vpack.c.bf16 %v1208, %v1207
      %v1264 = vpack.c.bf16 %v1210, %v1209
      %v1265 = vpack.c.bf16 %v1212, %v1211
      %v1266 = vpack.c.bf16 %v1214, %v1213
      %v1267 = vpack.c.bf16 %v1216, %v1215
      %v1268 = vpack.c.bf16 %v1218, %v1217
      %v1269 = vpack.c.bf16 %v1220, %v1219
      %v1270 = vpack.c.bf16 %v1222, %v1221
      %v1271 = vpack.c.bf16 %v1224, %v1223
      %v1272 = vpack.c.bf16 %v1226, %v1225
      %v1273 = vpack.c.bf16 %v1228, %v1227
      %v1274 = vpack.c.bf16 %v1230, %v1229
      %v1275 = vpack.c.bf16 %v1232, %v1231
      %v1276 = vpack.c.bf16 %v1234, %v1233
      %v1277 = vpack.c.bf16 %v1236, %v1235
      %v1278 = vpack.c.bf16 %v1238, %v1237
      %v1279 = vpack.c.bf16 %v1240, %v1239
      %v1280 = vpack.c.bf16 %v1242, %v1241
      %v1281 = vpack.c.bf16 %v1244, %v1243
      %v1282 = vpack.c.bf16 %v1246, %v1245
      %v1283 = vpack.c.bf16 %v1248, %v1247
      %v1284 = vpack.c.bf16 %v1250, %v1249
      %v1285 = vpack.c.bf16 %v1252, %v1251
      %v1286 = vpack.c.bf16 %v1254, %v1253
      %v1287 = vld [vmem:[%s5] sm:$0xf]
      %v1288 = vld [vmem:[%s5 + $0x4] sm:$0xf]
      %v1289 = vld [vmem:[%s5 + $0x8] sm:$0xf]
      %v1290 = vld [vmem:[%s5 + $0xc] sm:$0xf]
      %v1291 = vld [vmem:[%s5 + $0x10] sm:$0xf]
      %v1292 = vld [vmem:[%s5 + $0x14] sm:$0xf]
      %v1293 = vld [vmem:[%s5 + $0x18] sm:$0xf]
      %v1294 = vld [vmem:[%s5 + $0x1c] sm:$0xf]
      %v1295 = vld [vmem:[%s6] sm:$0x1]
      %v1297 = vperm.slane %v1295, 0
      %v1307 = vunpack.c.l.b16 %v1287
      %v1308 = vunpack.c.l.b16 %v1288
      %v1309 = vunpack.c.l.b16 %v1289
      %v1310 = vunpack.c.l.b16 %v1290
      %v1311 = vunpack.c.l.b16 %v1291
      %v1312 = vunpack.c.l.b16 %v1292
      %v1313 = vunpack.c.l.b16 %v1293
      %v1314 = vunpack.c.l.b16 %v1294
      %v1315 = vpack.c.b16 %v1308, %v1307
      %v1316 = vpack.c.b16 %v1310, %v1309
      %v1317 = vpack.c.b16 %v1312, %v1311
      %v1318 = vpack.c.b16 %v1314, %v1313
      %v1324 = vsel %vm861, %v1255, 0
      %v1327 = vsel %vm861, %v1256, 0
      %v1330 = vsel %vm861, %v1257, 0
      %v1333 = vsel %vm861, %v1258, 0
      %v1336 = vsel %vm861, %v1259, 0
      %v1339 = vsel %vm861, %v1260, 0
      %v1342 = vsel %vm861, %v1261, 0
      %v1345 = vsel %vm861, %v1262, 0
      %v1348 = vsel %vm861, %v1263, 0
      %v1351 = vsel %vm861, %v1264, 0
      %v1354 = vsel %vm861, %v1265, 0
      %v1357 = vsel %vm861, %v1266, 0
      %v1360 = vsel %vm861, %v1267, 0
      %v1363 = vsel %vm861, %v1268, 0
      %v1366 = vsel %vm861, %v1269, 0
      %v1369 = vsel %vm861, %v1270, 0
      %v1372 = vsel %vm861, %v1271, 0
      %v1375 = vsel %vm861, %v1272, 0
      %v1378 = vsel %vm861, %v1273, 0
      %v1381 = vsel %vm861, %v1274, 0
      %v1384 = vsel %vm861, %v1275, 0
      %v1387 = vsel %vm861, %v1276, 0
      %v1390 = vsel %vm861, %v1277, 0
      %v1393 = vsel %vm861, %v1278, 0
      %v1396 = vsel %vm861, %v1279, 0
      %v1399 = vsel %vm861, %v1280, 0
      %v1402 = vsel %vm861, %v1281, 0
      %v1405 = vsel %vm861, %v1282, 0
      %v1408 = vsel %vm861, %v1283, 0
      %v1411 = vsel %vm861, %v1284, 0
      %v1414 = vsel %vm861, %v1285, 0
      %v1417 = vsel %vm861, %v1286, 0
      %1419 = vmatpush.bf16.msra.mxu0 0
      %1420 = vmatpush.bf16.msra.mxu0 0
      %1421 = vmatpush.bf16.msra.mxu0 0
      %1422 = vmatpush.bf16.msra.mxu0 0
      %1423 = vmatpush.bf16.msra.mxu0 %v1318
      %1424 = vmatpush.bf16.msra.mxu0 %v1317
      %1425 = vmatpush.bf16.msra.mxu0 %v1316
      %1426 = vmatpush.bf16.msra.mxu0 %v1315
      %1427 = vmatmul.bf16.gmra.mxu0 %v1324
      %v1428 = vpop.f32.mrf.mxu0
      %v1429 = vadd.f32 %v1297, %v1428
      %v1430 = vpop.f32.mrf.mxu0
      %v1431 = vadd.f32 %v1297, %v1430
      %1432 = vmatmul.bf16.gmra.mxu0 %v1327
      %v1433 = vpop.f32.mrf.mxu0
      %v1434 = vadd.f32 %v1297, %v1433
      %v1435 = vpop.f32.mrf.mxu0
      %v1436 = vadd.f32 %v1297, %v1435
      %1437 = vmatmul.bf16.gmra.mxu0 %v1330
      %v1438 = vpop.f32.mrf.mxu0
      %v1439 = vadd.f32 %v1297, %v1438
      %v1440 = vpop.f32.mrf.mxu0
      %v1441 = vadd.f32 %v1297, %v1440
      %1442 = vmatmul.bf16.gmra.mxu0 %v1333
      %v1443 = vpop.f32.mrf.mxu0
      %v1444 = vadd.f32 %v1297, %v1443
      %v1445 = vpop.f32.mrf.mxu0
      %v1446 = vadd.f32 %v1297, %v1445
      %1447 = vmatmul.bf16.gmra.mxu0 %v1336
      %v1448 = vpop.f32.mrf.mxu0
      %v1449 = vadd.f32 %v1297, %v1448
      %v1450 = vpop.f32.mrf.mxu0
      %v1451 = vadd.f32 %v1297, %v1450
      %1452 = vmatmul.bf16.gmra.mxu0 %v1339
      %v1453 = vpop.f32.mrf.mxu0
      %v1454 = vadd.f32 %v1297, %v1453
      %v1455 = vpop.f32.mrf.mxu0
      %v1456 = vadd.f32 %v1297, %v1455
      %1457 = vmatmul.bf16.gmra.mxu0 %v1342
      %v1458 = vpop.f32.mrf.mxu0
      %v1459 = vadd.f32 %v1297, %v1458
      %v1460 = vpop.f32.mrf.mxu0
      %v1461 = vadd.f32 %v1297, %v1460
      %1462 = vmatmul.bf16.gmra.mxu0 %v1345
      %v1463 = vpop.f32.mrf.mxu0
      %v1464 = vadd.f32 %v1297, %v1463
      %v1465 = vpop.f32.mrf.mxu0
      %v1466 = vadd.f32 %v1297, %v1465
      %1467 = vmatmul.bf16.gmra.mxu0 %v1348
      %v1468 = vpop.f32.mrf.mxu0
      %v1469 = vadd.f32 %v1297, %v1468
      %v1470 = vpop.f32.mrf.mxu0
      %v1471 = vadd.f32 %v1297, %v1470
      %1472 = vmatmul.bf16.gmra.mxu0 %v1351
      %v1473 = vpop.f32.mrf.mxu0
      %v1474 = vadd.f32 %v1297, %v1473
      %v1475 = vpop.f32.mrf.mxu0
      %v1476 = vadd.f32 %v1297, %v1475
      %1477 = vmatmul.bf16.gmra.mxu0 %v1354
      %v1478 = vpop.f32.mrf.mxu0
      %v1479 = vadd.f32 %v1297, %v1478
      %v1480 = vpop.f32.mrf.mxu0
      %v1481 = vadd.f32 %v1297, %v1480
      %1482 = vmatmul.bf16.gmra.mxu0 %v1357
      %v1483 = vpop.f32.mrf.mxu0
      %v1484 = vadd.f32 %v1297, %v1483
      %v1485 = vpop.f32.mrf.mxu0
      %v1486 = vadd.f32 %v1297, %v1485
      %1487 = vmatmul.bf16.gmra.mxu0 %v1360
      %v1488 = vpop.f32.mrf.mxu0
      %v1489 = vadd.f32 %v1297, %v1488
      %v1490 = vpop.f32.mrf.mxu0
      %v1491 = vadd.f32 %v1297, %v1490
      %1492 = vmatmul.bf16.gmra.mxu0 %v1363
      %v1493 = vpop.f32.mrf.mxu0
      %v1494 = vadd.f32 %v1297, %v1493
      %v1495 = vpop.f32.mrf.mxu0
      %v1496 = vadd.f32 %v1297, %v1495
      %1497 = vmatmul.bf16.gmra.mxu0 %v1366
      %v1498 = vpop.f32.mrf.mxu0
      %v1499 = vadd.f32 %v1297, %v1498
      %v1500 = vpop.f32.mrf.mxu0
      %v1501 = vadd.f32 %v1297, %v1500
      %1502 = vmatmul.bf16.gmra.mxu0 %v1369
      %v1503 = vpop.f32.mrf.mxu0
      %v1504 = vadd.f32 %v1297, %v1503
      %v1505 = vpop.f32.mrf.mxu0
      %v1506 = vadd.f32 %v1297, %v1505
      %1507 = vmatmul.bf16.gmra.mxu0 %v1372
      %v1508 = vpop.f32.mrf.mxu0
      %v1509 = vadd.f32 %v1297, %v1508
      %v1510 = vpop.f32.mrf.mxu0
      %v1511 = vadd.f32 %v1297, %v1510
      %1512 = vmatmul.bf16.gmra.mxu0 %v1375
      %v1513 = vpop.f32.mrf.mxu0
      %v1514 = vadd.f32 %v1297, %v1513
      %v1515 = vpop.f32.mrf.mxu0
      %v1516 = vadd.f32 %v1297, %v1515
      %1517 = vmatmul.bf16.gmra.mxu0 %v1378
      %v1518 = vpop.f32.mrf.mxu0
      %v1519 = vadd.f32 %v1297, %v1518
      %v1520 = vpop.f32.mrf.mxu0
      %v1521 = vadd.f32 %v1297, %v1520
      %1522 = vmatmul.bf16.gmra.mxu0 %v1381
      %v1523 = vpop.f32.mrf.mxu0
      %v1524 = vadd.f32 %v1297, %v1523
      %v1525 = vpop.f32.mrf.mxu0
      %v1526 = vadd.f32 %v1297, %v1525
      %1527 = vmatmul.bf16.gmra.mxu0 %v1384
      %v1528 = vpop.f32.mrf.mxu0
      %v1529 = vadd.f32 %v1297, %v1528
      %v1530 = vpop.f32.mrf.mxu0
      %v1531 = vadd.f32 %v1297, %v1530
      %1532 = vmatmul.bf16.gmra.mxu0 %v1387
      %v1533 = vpop.f32.mrf.mxu0
      %v1534 = vadd.f32 %v1297, %v1533
      %v1535 = vpop.f32.mrf.mxu0
      %v1536 = vadd.f32 %v1297, %v1535
      %1537 = vmatmul.bf16.gmra.mxu0 %v1390
      %v1538 = vpop.f32.mrf.mxu0
      %v1539 = vadd.f32 %v1297, %v1538
      %v1540 = vpop.f32.mrf.mxu0
      %v1541 = vadd.f32 %v1297, %v1540
      %1542 = vmatmul.bf16.gmra.mxu0 %v1393
      %v1543 = vpop.f32.mrf.mxu0
      %v1544 = vadd.f32 %v1297, %v1543
      %v1545 = vpop.f32.mrf.mxu0
      %v1546 = vadd.f32 %v1297, %v1545
      %1547 = vmatmul.bf16.gmra.mxu0 %v1396
      %v1548 = vpop.f32.mrf.mxu0
      %v1549 = vadd.f32 %v1297, %v1548
      %v1550 = vpop.f32.mrf.mxu0
      %v1551 = vadd.f32 %v1297, %v1550
      %1552 = vmatmul.bf16.gmra.mxu0 %v1399
      %v1553 = vpop.f32.mrf.mxu0
      %v1554 = vadd.f32 %v1297, %v1553
      %v1555 = vpop.f32.mrf.mxu0
      %v1556 = vadd.f32 %v1297, %v1555
      %1557 = vmatmul.bf16.gmra.mxu0 %v1402
      %v1558 = vpop.f32.mrf.mxu0
      %v1559 = vadd.f32 %v1297, %v1558
      %v1560 = vpop.f32.mrf.mxu0
      %v1561 = vadd.f32 %v1297, %v1560
      %1562 = vmatmul.bf16.gmra.mxu0 %v1405
      %v1563 = vpop.f32.mrf.mxu0
      %v1564 = vadd.f32 %v1297, %v1563
      %v1565 = vpop.f32.mrf.mxu0
      %v1566 = vadd.f32 %v1297, %v1565
      %1567 = vmatmul.bf16.gmra.mxu0 %v1408
      %v1568 = vpop.f32.mrf.mxu0
      %v1569 = vadd.f32 %v1297, %v1568
      %v1570 = vpop.f32.mrf.mxu0
      %v1571 = vadd.f32 %v1297, %v1570
      %1572 = vmatmul.bf16.gmra.mxu0 %v1411
      %v1573 = vpop.f32.mrf.mxu0
      %v1574 = vadd.f32 %v1297, %v1573
      %v1575 = vpop.f32.mrf.mxu0
      %v1576 = vadd.f32 %v1297, %v1575
      %1577 = vmatmul.bf16.gmra.mxu0 %v1414
      %v1578 = vpop.f32.mrf.mxu0
      %v1579 = vadd.f32 %v1297, %v1578
      %v1580 = vpop.f32.mrf.mxu0
      %v1581 = vadd.f32 %v1297, %v1580
      %1582 = vmatmul.bf16.gmra.mxu0 %v1417
      %v1583 = vpop.f32.mrf.mxu0
      %v1584 = vadd.f32 %v1297, %v1583
      %v1585 = vpop.f32.mrf.mxu0
      %v1586 = vadd.f32 %v1297, %v1585
      %1587 = vdwg.mxu0
      %v1588 = vmul.f32 %v1429, 0.01
      %v1589 = vmul.f32 %v1431, 0.01
      %v1590 = vmul.f32 %v1434, 0.01
      %v1591 = vmul.f32 %v1436, 0.01
      %v1592 = vmul.f32 %v1439, 0.01
      %v1593 = vmul.f32 %v1441, 0.01
      %v1594 = vmul.f32 %v1444, 0.01
      %v1595 = vmul.f32 %v1446, 0.01
      %v1596 = vmul.f32 %v1449, 0.01
      %v1597 = vmul.f32 %v1451, 0.01
      %v1598 = vmul.f32 %v1454, 0.01
      %v1599 = vmul.f32 %v1456, 0.01
      %v1600 = vmul.f32 %v1459, 0.01
      %v1601 = vmul.f32 %v1461, 0.01
      %v1602 = vmul.f32 %v1464, 0.01
      %v1603 = vmul.f32 %v1466, 0.01
      %v1604 = vmul.f32 %v1469, 0.01
      %v1605 = vmul.f32 %v1471, 0.01
      %v1606 = vmul.f32 %v1474, 0.01
      %v1607 = vmul.f32 %v1476, 0.01
      %v1608 = vmul.f32 %v1479, 0.01
      %v1609 = vmul.f32 %v1481, 0.01
      %v1610 = vmul.f32 %v1484, 0.01
      %v1611 = vmul.f32 %v1486, 0.01
      %v1612 = vmul.f32 %v1489, 0.01
      %v1613 = vmul.f32 %v1491, 0.01
      %v1614 = vmul.f32 %v1494, 0.01
      %v1615 = vmul.f32 %v1496, 0.01
      %v1616 = vmul.f32 %v1499, 0.01
      %v1617 = vmul.f32 %v1501, 0.01
      %v1618 = vmul.f32 %v1504, 0.01
      %v1619 = vmul.f32 %v1506, 0.01
      %v1620 = vmul.f32 %v1509, 0.01
      %v1621 = vmul.f32 %v1511, 0.01
      %v1622 = vmul.f32 %v1514, 0.01
      %v1623 = vmul.f32 %v1516, 0.01
      %v1624 = vmul.f32 %v1519, 0.01
      %v1625 = vmul.f32 %v1521, 0.01
      %v1626 = vmul.f32 %v1524, 0.01
      %v1627 = vmul.f32 %v1526, 0.01
      %v1628 = vmul.f32 %v1529, 0.01
      %v1629 = vmul.f32 %v1531, 0.01
      %v1630 = vmul.f32 %v1534, 0.01
      %v1631 = vmul.f32 %v1536, 0.01
      %v1632 = vmul.f32 %v1539, 0.01
      %v1633 = vmul.f32 %v1541, 0.01
      %v1634 = vmul.f32 %v1544, 0.01
      %v1635 = vmul.f32 %v1546, 0.01
      %v1636 = vmul.f32 %v1549, 0.01
      %v1637 = vmul.f32 %v1551, 0.01
      %v1638 = vmul.f32 %v1554, 0.01
      %v1639 = vmul.f32 %v1556, 0.01
      %v1640 = vmul.f32 %v1559, 0.01
      %v1641 = vmul.f32 %v1561, 0.01
      %v1642 = vmul.f32 %v1564, 0.01
      %v1643 = vmul.f32 %v1566, 0.01
      %v1644 = vmul.f32 %v1569, 0.01
      %v1645 = vmul.f32 %v1571, 0.01
      %v1646 = vmul.f32 %v1574, 0.01
      %v1647 = vmul.f32 %v1576, 0.01
      %v1648 = vmul.f32 %v1579, 0.01
      %v1649 = vmul.f32 %v1581, 0.01
      %v1650 = vmul.f32 %v1584, 0.01
      %v1651 = vmul.f32 %v1586, 0.01
      %v1652 = vmax.f32 %v1429, %v1588
      %v1653 = vmax.f32 %v1431, %v1589
      %v1654 = vmax.f32 %v1434, %v1590
      %v1655 = vmax.f32 %v1436, %v1591
      %v1656 = vmax.f32 %v1439, %v1592
      %v1657 = vmax.f32 %v1441, %v1593
      %v1658 = vmax.f32 %v1444, %v1594
      %v1659 = vmax.f32 %v1446, %v1595
      %v1660 = vmax.f32 %v1449, %v1596
      %v1661 = vmax.f32 %v1451, %v1597
      %v1662 = vmax.f32 %v1454, %v1598
      %v1663 = vmax.f32 %v1456, %v1599
      %v1664 = vmax.f32 %v1459, %v1600
      %v1665 = vmax.f32 %v1461, %v1601
      %v1666 = vmax.f32 %v1464, %v1602
      %v1667 = vmax.f32 %v1466, %v1603
      %v1668 = vmax.f32 %v1469, %v1604
      %v1669 = vmax.f32 %v1471, %v1605
      %v1670 = vmax.f32 %v1474, %v1606
      %v1671 = vmax.f32 %v1476, %v1607
      %v1672 = vmax.f32 %v1479, %v1608
      %v1673 = vmax.f32 %v1481, %v1609
      %v1674 = vmax.f32 %v1484, %v1610
      %v1675 = vmax.f32 %v1486, %v1611
      %v1676 = vmax.f32 %v1489, %v1612
      %v1677 = vmax.f32 %v1491, %v1613
      %v1678 = vmax.f32 %v1494, %v1614
      %v1679 = vmax.f32 %v1496, %v1615
      %v1680 = vmax.f32 %v1499, %v1616
      %v1681 = vmax.f32 %v1501, %v1617
      %v1682 = vmax.f32 %v1504, %v1618
      %v1683 = vmax.f32 %v1506, %v1619
      %v1684 = vmax.f32 %v1509, %v1620
      %v1685 = vmax.f32 %v1511, %v1621
      %v1686 = vmax.f32 %v1514, %v1622
      %v1687 = vmax.f32 %v1516, %v1623
      %v1688 = vmax.f32 %v1519, %v1624
      %v1689 = vmax.f32 %v1521, %v1625
      %v1690 = vmax.f32 %v1524, %v1626
      %v1691 = vmax.f32 %v1526, %v1627
      %v1692 = vmax.f32 %v1529, %v1628
      %v1693 = vmax.f32 %v1531, %v1629
      %v1694 = vmax.f32 %v1534, %v1630
      %v1695 = vmax.f32 %v1536, %v1631
      %v1696 = vmax.f32 %v1539, %v1632
      %v1697 = vmax.f32 %v1541, %v1633
      %v1698 = vmax.f32 %v1544, %v1634
      %v1699 = vmax.f32 %v1546, %v1635
      %v1700 = vmax.f32 %v1549, %v1636
      %v1701 = vmax.f32 %v1551, %v1637
      %v1702 = vmax.f32 %v1554, %v1638
      %v1703 = vmax.f32 %v1556, %v1639
      %v1704 = vmax.f32 %v1559, %v1640
      %v1705 = vmax.f32 %v1561, %v1641
      %v1706 = vmax.f32 %v1564, %v1642
      %v1707 = vmax.f32 %v1566, %v1643
      %v1708 = vmax.f32 %v1569, %v1644
      %v1709 = vmax.f32 %v1571, %v1645
      %v1710 = vmax.f32 %v1574, %v1646
      %v1711 = vmax.f32 %v1576, %v1647
      %v1712 = vmax.f32 %v1579, %v1648
      %v1713 = vmax.f32 %v1581, %v1649
      %v1714 = vmax.f32 %v1584, %v1650
      %v1715 = vmax.f32 %v1586, %v1651
      %vm1716 = vcmask 39936
      %1717 = vst.msk [vmem:[%s280] sm:$0xff] %vm1716, %v1652
      %1718 = vst.msk [vmem:[%s280 + $0x8] sm:$0xff] %vm1716, %v1653
      %1719 = vst.msk [vmem:[%s280 + $0x10] sm:$0xff] %vm1716, %v1654
      %1720 = vst.msk [vmem:[%s280 + $0x18] sm:$0xff] %vm1716, %v1655
      %1721 = vst.msk [vmem:[%s280 + $0x20] sm:$0xff] %vm1716, %v1656
      %1722 = vst.msk [vmem:[%s280 + $0x28] sm:$0xff] %vm1716, %v1657
      %1723 = vst.msk [vmem:[%s280 + $0x30] sm:$0xff] %vm1716, %v1658
      %1724 = vst.msk [vmem:[%s280 + $0x38] sm:$0xff] %vm1716, %v1659
      %1725 = vst.msk [vmem:[%s280 + $0x40] sm:$0xff] %vm1716, %v1660
      %1726 = vst.msk [vmem:[%s280 + $0x48] sm:$0xff] %vm1716, %v1661
      %1727 = vst.msk [vmem:[%s280 + $0x50] sm:$0xff] %vm1716, %v1662
      %1728 = vst.msk [vmem:[%s280 + $0x58] sm:$0xff] %vm1716, %v1663
      %1729 = vst.msk [vmem:[%s280 + $0x60] sm:$0xff] %vm1716, %v1664
      %1730 = vst.msk [vmem:[%s280 + $0x68] sm:$0xff] %vm1716, %v1665
      %1731 = vst.msk [vmem:[%s280 + $0x70] sm:$0xff] %vm1716, %v1666
      %1732 = vst.msk [vmem:[%s280 + $0x78] sm:$0xff] %vm1716, %v1667
      %1733 = vst.msk [vmem:[%s280 + $0x80] sm:$0xff] %vm1716, %v1668
      %1734 = vst.msk [vmem:[%s280 + $0x88] sm:$0xff] %vm1716, %v1669
      %1735 = vst.msk [vmem:[%s280 + $0x90] sm:$0xff] %vm1716, %v1670
      %1736 = vst.msk [vmem:[%s280 + $0x98] sm:$0xff] %vm1716, %v1671
      %1737 = vst.msk [vmem:[%s280 + $0xa0] sm:$0xff] %vm1716, %v1672
      %1738 = vst.msk [vmem:[%s280 + $0xa8] sm:$0xff] %vm1716, %v1673
      %1739 = vst.msk [vmem:[%s280 + $0xb0] sm:$0xff] %vm1716, %v1674
      %1740 = vst.msk [vmem:[%s280 + $0xb8] sm:$0xff] %vm1716, %v1675
      %1741 = vst.msk [vmem:[%s280 + $0xc0] sm:$0xff] %vm1716, %v1676
      %1742 = vst.msk [vmem:[%s280 + $0xc8] sm:$0xff] %vm1716, %v1677
      %1743 = vst.msk [vmem:[%s280 + $0xd0] sm:$0xff] %vm1716, %v1678
      %1744 = vst.msk [vmem:[%s280 + $0xd8] sm:$0xff] %vm1716, %v1679
      %1745 = vst.msk [vmem:[%s280 + $0xe0] sm:$0xff] %vm1716, %v1680
      %1746 = vst.msk [vmem:[%s280 + $0xe8] sm:$0xff] %vm1716, %v1681
      %1747 = vst.msk [vmem:[%s280 + $0xf0] sm:$0xff] %vm1716, %v1682
      %1748 = vst.msk [vmem:[%s280 + $0xf8] sm:$0xff] %vm1716, %v1683
      %1749 = vst.msk [vmem:[%s280 + $0x100] sm:$0xff] %vm1716, %v1684
      %1750 = vst.msk [vmem:[%s280 + $0x108] sm:$0xff] %vm1716, %v1685
      %1751 = vst.msk [vmem:[%s280 + $0x110] sm:$0xff] %vm1716, %v1686
      %1752 = vst.msk [vmem:[%s280 + $0x118] sm:$0xff] %vm1716, %v1687
      %1753 = vst.msk [vmem:[%s280 + $0x120] sm:$0xff] %vm1716, %v1688
      %1754 = vst.msk [vmem:[%s280 + $0x128] sm:$0xff] %vm1716, %v1689
      %1755 = vst.msk [vmem:[%s280 + $0x130] sm:$0xff] %vm1716, %v1690
      %1756 = vst.msk [vmem:[%s280 + $0x138] sm:$0xff] %vm1716, %v1691
      %1757 = vst.msk [vmem:[%s280 + $0x140] sm:$0xff] %vm1716, %v1692
      %1758 = vst.msk [vmem:[%s280 + $0x148] sm:$0xff] %vm1716, %v1693
      %1759 = vst.msk [vmem:[%s280 + $0x150] sm:$0xff] %vm1716, %v1694
      %1760 = vst.msk [vmem:[%s280 + $0x158] sm:$0xff] %vm1716, %v1695
      %1761 = vst.msk [vmem:[%s280 + $0x160] sm:$0xff] %vm1716, %v1696
      %1762 = vst.msk [vmem:[%s280 + $0x168] sm:$0xff] %vm1716, %v1697
      %1763 = vst.msk [vmem:[%s280 + $0x170] sm:$0xff] %vm1716, %v1698
      %1764 = vst.msk [vmem:[%s280 + $0x178] sm:$0xff] %vm1716, %v1699
      %1765 = vst.msk [vmem:[%s280 + $0x180] sm:$0xff] %vm1716, %v1700
      %1766 = vst.msk [vmem:[%s280 + $0x188] sm:$0xff] %vm1716, %v1701
      %1767 = vst.msk [vmem:[%s280 + $0x190] sm:$0xff] %vm1716, %v1702
      %1768 = vst.msk [vmem:[%s280 + $0x198] sm:$0xff] %vm1716, %v1703
      %1769 = vst.msk [vmem:[%s280 + $0x1a0] sm:$0xff] %vm1716, %v1704
      %1770 = vst.msk [vmem:[%s280 + $0x1a8] sm:$0xff] %vm1716, %v1705
      %1771 = vst.msk [vmem:[%s280 + $0x1b0] sm:$0xff] %vm1716, %v1706
      %1772 = vst.msk [vmem:[%s280 + $0x1b8] sm:$0xff] %vm1716, %v1707
      %1773 = vst.msk [vmem:[%s280 + $0x1c0] sm:$0xff] %vm1716, %v1708
      %1774 = vst.msk [vmem:[%s280 + $0x1c8] sm:$0xff] %vm1716, %v1709
      %1775 = vst.msk [vmem:[%s280 + $0x1d0] sm:$0xff] %vm1716, %v1710
      %1776 = vst.msk [vmem:[%s280 + $0x1d8] sm:$0xff] %vm1716, %v1711
      %1777 = vst.msk [vmem:[%s280 + $0x1e0] sm:$0xff] %vm1716, %v1712
      %1778 = vst.msk [vmem:[%s280 + $0x1e8] sm:$0xff] %vm1716, %v1713
      %1779 = vst.msk [vmem:[%s280 + $0x1f0] sm:$0xff] %vm1716, %v1714
      %1780 = vst.msk [vmem:[%s280 + $0x1f8] sm:$0xff] %vm1716, %v1715
      %s1781 = smul.u32 64, %s18
      %p1782 = scmp.lt.s32.totalorder %s1781, 127
      %s1783 = scalar_select %p1782, %s1781, 127
      %s1784 = smul.addr %s1783, 8
      %s1785 = scalar_lea.vmem %s7, %s1784
      // Predicated region
      $region49: #{mlp_forward.1} parent=47 // pred_check
        %p1786 = pneg %p188
      $region50: #{mlp_forward.1} parent=47 // pred_check_branch
        %1788 = sbr.rel (%p1786) target = $region52
      $region51: #{mlp_forward.1} parent=47 // pred_region
        %s1789 = smul.u32 64, %s18
      $region52: #{mlp_forward.1} parent=47 // pred_fallthru
        _
    $region48: #{mlp_forward.1} parent=5 // pred_fallthru
      _
    %p1790 = scmp.le.s32.totalorder 2, %s13
    // Predicated region
    $region53: #{mlp_forward.1} parent=5 // pred_check
      %p1791 = pneg %p1790
    $region54: #{mlp_forward.1} parent=5 // pred_check_branch
      %1793 = sbr.rel (%p1791) target = $region56
    $region55: #{mlp_forward.1} parent=5 // pred_region
      %s1794 = ssub.s32 %s13, 2
      // Predicated region
      $region57: #{mlp_forward.1} parent=55 // pred_check
        %p1795 = pneg %p194
      $region58: #{mlp_forward.1} parent=55 // pred_check_branch
        %1797 = sbr.rel (%p1795) target = $region60
      $region59: #{mlp_forward.1} parent=55 // pred_region
        %s1798 = smul.u32 64, %s19
        %p1799 = scmp.lt.s32.totalorder %s1798, 127
        %s1800 = scalar_select %p1799, %s1798, 127
        %s1801 = smul.addr %s1800, 8
        %s1802 = scalar_lea.vmem %s7, %s1801
      $region60: #{mlp_forward.1} parent=55 // pred_fallthru
        _
    $region56: #{mlp_forward.1} parent=5 // pred_fallthru
      _
  $region6: #{mlp_forward.1} parent=0 // loop_footer
    %s17 = sadd.s32 1, %s13
  $region7: #{mlp_forward.1} parent=0 // loop_footer_branch
    %12 = sbr.rel target = $region3
  $region8: #{mlp_forward.1} parent=0 // loop_exit
    _

</llo_original>
